<compile_context>
chip_gen: v7x
topology: tpu7x:2x2x1
jax: 0.10.0
libtpu: 0.0.40
codegen_flags: <defaults>
</compile_context>

<pallas_src>
import jax
import jax.numpy as jnp
from jax.experimental import pallas as pl
from jax.experimental.pallas import tpu as pltpu

SAMPLE_RATE = 24000
DRY_LEVEL = 0.4      # pedalboard.Reverb default dry_level
WET_LEVEL = 0.33     # pedalboard.Reverb default wet_level
ROOM_SIZE = 0.5      # deterministic stand-in for `random.random()` room_size
IR_LEN = 512         # synthetic impulse-response length (taps)

LANE = 128           # samples per time block (lane width)
HALO = 8             # history blocks fetched per tile (>= D-1, multiple of 8)


def _make_impulse_response(key, room_size, ir_len):
    """Deterministic exponentially-decaying noise IR; room_size sets decay."""
    k = jnp.arange(ir_len, dtype=jnp.float32)
    tau = ir_len * (0.15 + 0.85 * room_size)
    noise = jax.random.normal(key, (ir_len,), dtype=jnp.float32)
    ir = noise * jnp.exp(-k / tau)
    ir = ir / jnp.sqrt(jnp.sum(ir * ir) + 1e-8)   # unit-energy reverb tail
    return ir


def _make_toeplitz_weights(ir, lane=LANE, dtype=jnp.float32):
    """Fold the IR into D dense (lane, lane) Toeplitz matrices.

    W[d, j, i] = ir[d*lane + i - j]  (0 where out of range), so that
        wet[c, b*lane + i] = sum_d sum_j x[c, (b-d)*lane + j] * W[d, j, i].
    """
    K = ir.shape[0]
    D = (K + lane - 2) // lane + 1               # number of block delays needed
    j = jnp.arange(lane)[None, :, None]
    i = jnp.arange(lane)[None, None, :]
    d = jnp.arange(D)[:, None, None]
    k = d * lane + i - j                         # (D, lane, lane) tap index
    valid = (k >= 0) & (k < K)
    ir_pad = jnp.concatenate([ir.astype(jnp.float32), jnp.zeros((1,), jnp.float32)])
    W = jnp.where(valid, ir_pad[jnp.clip(k, 0, K)], 0.0)
    return W.astype(dtype)                       # (D, lane, lane)


def _reverb_kernel(w_ref, cur_ref, halo_ref, out_ref, win_ref):
    """Block-Toeplitz FIR convolution reverb + wet/dry mix (one time tile).

    w_ref    : (D, 128, 128)   VMEM — Toeplitz IR weights (resident, operand dtype)
    cur_ref  : (C, TB, 128)    VMEM — current time blocks (f32)
    halo_ref : (C, HALO, 128)  VMEM — last HALO blocks before this tile (f32)
    out_ref  : (C, TB, 128)    VMEM — mixed output
    win_ref  : (C, TB+HALO,128) VMEM scratch — [history | current], operand dtype
    """
    C, TB, L = out_ref.shape
    D = w_ref.shape[0]
    H = halo_ref.shape[1]

    # Assemble the overlap-save window (aligned full-tile stores, one cast).
    win_ref[:, :H, :] = halo_ref[...].astype(win_ref.dtype)
    win_ref[:, H:, :] = cur_ref[...].astype(win_ref.dtype)

    # Per-channel block-Toeplitz FIR: D chained MXU matmuls into one f32 accumulator.
    # The 2-D static shifted slices feed jnp.dot directly (no cross-channel reshape).
    for c in range(C):                           # static, C is small
        acc = jnp.zeros((TB, L), jnp.float32)
        for d in range(D):                       # static unroll, D ~ 5
            lhs = win_ref[c, H - d:H - d + TB, :]          # (TB, L)
            acc = acc + jnp.dot(lhs, w_ref[d],
                                preferred_element_type=jnp.float32)
        out_ref[c] = (DRY_LEVEL * cur_ref[c] + WET_LEVEL * acc).astype(out_ref.dtype)


def reverb_from_soundboard(x, ir, *, time_blocks_per_step=128,
                           operand_dtype=jnp.bfloat16):
    """x: (C, N) float32 audio; ir: (K,) float32 impulse response."""
    C, N = x.shape
    L = LANE
    TB = time_blocks_per_step
    H = HALO
    W = _make_toeplitz_weights(ir, L, dtype=operand_dtype)   # (D, L, L)
    D = W.shape[0]
    assert D - 1 <= H, "IR too long for HALO history blocks"
    assert TB % H == 0 and H % 8 == 0

    # Pad time to a whole number of (TB * L)-sample tiles, reshape to blocks.
    NB = (N + L - 1) // L
    NBp = ((NB + TB - 1) // TB) * TB
    Np = NBp * L
    xb = jnp.pad(x.astype(jnp.float32), ((0, 0), (0, Np - N))).reshape(C, NBp, L)
    # TB zero "history" blocks in front (zero state before the clip starts).
    xp = jnp.pad(xb, ((0, 0), (TB, 0), (0, 0)))              # (C, NBp + TB, L)

    T = NBp // TB
    out = pl.pallas_call(
        _reverb_kernel,
        out_shape=jax.ShapeDtypeStruct((C, NBp, L), x.dtype),
        grid=(T,),
        in_specs=[
            pl.BlockSpec((D, L, L), lambda t: (0, 0, 0)),          # W, resident
            pl.BlockSpec((C, TB, L), lambda t: (0, t + 1, 0)),     # current tile
            pl.BlockSpec((C, H, L),                                # 8-block halo only
                         lambda t: (0, (t + 1) * (TB // H) - 1, 0)),
        ],
        out_specs=pl.BlockSpec((C, TB, L), lambda t: (0, t, 0)),
        scratch_shapes=[pltpu.VMEM((C, TB + H, L), operand_dtype)],
        compiler_params=pltpu.CompilerParams(
            dimension_semantics=("parallel",)),                    # v7x megacore
    )(W, xp, xp)

    return out.reshape(C, Np)[:, :N]


if __name__ == "__main__":
    key = jax.random.PRNGKey(0)
    k_audio, k_ir = jax.random.split(key)

    C, N = 2, 48000                               # small stereo clip (~2 s @ 24 kHz)
    x = jax.random.normal(k_audio, (C, N), dtype=jnp.float32) * 0.1
    ir = _make_impulse_response(k_ir, ROOM_SIZE, IR_LEN)

    # Pure-JAX reference for the same wet/dry convolution reverb.
    ref_wet = jax.vmap(lambda xc: jnp.convolve(xc, ir)[:N])(x)
    ref = DRY_LEVEL * x + WET_LEVEL * ref_wet

    out_bf16 = reverb_from_soundboard(x, ir)                               # bf16 MXU path
    out_f32 = reverb_from_soundboard(x, ir, operand_dtype=jnp.float32)     # exact f32 path
    out_bf16, out_f32 = jax.block_until_ready((out_bf16, out_f32))

    assert out_bf16.shape == x.shape and out_bf16.dtype == x.dtype
    assert out_f32.shape == x.shape and out_f32.dtype == x.dtype
    assert jnp.allclose(out_f32, ref, rtol=1e-3, atol=1e-4)
    assert jnp.allclose(out_bf16, ref, rtol=5e-2, atol=5e-3)
    print("KERNEL_OK")
</pallas_src>

<mosaic_0001>
module attributes {stable_mosaic.version = 11 : i64} {
  func.func @_reverb_kernel(%arg0: i32, %arg1: memref<5x128x128xbf16, #tpu.memory_space<vmem>>, %arg2: memref<2x128x128xf32, #tpu.memory_space<vmem>>, %arg3: memref<2x8x128xf32, #tpu.memory_space<vmem>>, %arg4: memref<2x128x128xf32, #tpu.memory_space<vmem>>, %arg5: memref<2x136x128xbf16, #tpu.memory_space<vmem>>) attributes {dimension_semantics = [#tpu.dimension_semantics<parallel>], iteration_bounds = array<i64: 3>, scalar_prefetch = 0 : i64, scratch_operands = 1 : i64, tpu.core_type = #tpu.core_type<tc>, window_params = [{pipeline_mode = #tpu.pipeline_mode<synchronous>, transform_indices = @transform_0, window_bounds = array<i64: 5, 128, 128>}, {transform_indices = @transform_1, window_bounds = array<i64: 2, 128, 128>}, {transform_indices = @transform_2, window_bounds = array<i64: 2, 8, 128>}, {transform_indices = @transform_3, window_bounds = array<i64: 2, 128, 128>}]} {
    %c0 = arith.constant 0 : index
    %c0_0 = arith.constant 0 : index
    %c0_1 = arith.constant 0 : index
    %0 = vector.load %arg3[%c0, %c0_0, %c0_1] : memref<2x8x128xf32, #tpu.memory_space<vmem>>, vector<2x8x128xf32>
    %1 = arith.truncf %0 : vector<2x8x128xf32> to vector<2x8x128xbf16>
    %c0_2 = arith.constant 0 : index
    %c0_3 = arith.constant 0 : index
    %c0_4 = arith.constant 0 : index
    %2 = vector.load %arg5[%c0_2, %c0_3, %c0_4] : memref<2x136x128xbf16, #tpu.memory_space<vmem>>, vector<2x8x128xbf16>
    tpu.vector_store %arg5[%c0_2, %c0_3, %c0_4], %1 {strides = array<i32>} : memref<2x136x128xbf16, #tpu.memory_space<vmem>>, vector<2x8x128xbf16>,
    %c0_5 = arith.constant 0 : index
    %c0_6 = arith.constant 0 : index
    %c0_7 = arith.constant 0 : index
    %3 = vector.load %arg2[%c0_5, %c0_6, %c0_7] : memref<2x128x128xf32, #tpu.memory_space<vmem>>, vector<2x128x128xf32>
    %4 = arith.truncf %3 : vector<2x128x128xf32> to vector<2x128x128xbf16>
    %c0_8 = arith.constant 0 : index
    %c8 = arith.constant 8 : index
    %c0_9 = arith.constant 0 : index
    %5 = vector.load %arg5[%c0_8, %c8, %c0_9] : memref<2x136x128xbf16, #tpu.memory_space<vmem>>, vector<2x128x128xbf16>
    tpu.vector_store %arg5[%c0_8, %c8, %c0_9], %4 {strides = array<i32>} : memref<2x136x128xbf16, #tpu.memory_space<vmem>>, vector<2x128x128xbf16>,
    %cst = arith.constant 0.000000e+00 : f32
    %6 = vector.broadcast %cst : f32 to vector<128x128xf32>
    %c0_10 = arith.constant 0 : index
    %c8_11 = arith.constant 8 : index
    %c0_12 = arith.constant 0 : index
    %7 = vector.load %arg5[%c0_10, %c8_11, %c0_12] : memref<2x136x128xbf16, #tpu.memory_space<vmem>>, vector<1x128x128xbf16>
    %8 = vector.shape_cast %7 : vector<1x128x128xbf16> to vector<128x128xbf16>
    %c0_13 = arith.constant 0 : index
    %c0_14 = arith.constant 0 : index
    %c0_15 = arith.constant 0 : index
    %9 = vector.load %arg1[%c0_13, %c0_14, %c0_15] : memref<5x128x128xbf16, #tpu.memory_space<vmem>>, vector<1x128x128xbf16>
    %10 = vector.shape_cast %9 : vector<1x128x128xbf16> to vector<128x128xbf16>
    %cst_16 = arith.constant dense<0.000000e+00> : vector<128x128xf32>
    %11 = tpu.matmul %8, %10, %cst_16 {dimension_numbers = #tpu.dot_dimension_numbers<[1], [0], [0], [1], [0, 0, 1, 1], [], []>} : vector<128x128xbf16>, vector<128x128xbf16>, vector<128x128xf32> -> vector<128x128xf32>
    %12 = arith.addf %6, %11 : vector<128x128xf32>
    %c0_17 = arith.constant 0 : index
    %c7 = arith.constant 7 : index
    %c0_18 = arith.constant 0 : index
    %13 = vector.load %arg5[%c0_17, %c7, %c0_18] : memref<2x136x128xbf16, #tpu.memory_space<vmem>>, vector<1x128x128xbf16>
    %14 = vector.shape_cast %13 : vector<1x128x128xbf16> to vector<128x128xbf16>
    %c1 = arith.constant 1 : index
    %c0_19 = arith.constant 0 : index
    %c0_20 = arith.constant 0 : index
    %15 = vector.load %arg1[%c1, %c0_19, %c0_20] : memref<5x128x128xbf16, #tpu.memory_space<vmem>>, vector<1x128x128xbf16>
    %16 = vector.shape_cast %15 : vector<1x128x128xbf16> to vector<128x128xbf16>
    %cst_21 = arith.constant dense<0.000000e+00> : vector<128x128xf32>
    %17 = tpu.matmul %14, %16, %cst_21 {dimension_numbers = #tpu.dot_dimension_numbers<[1], [0], [0], [1], [0, 0, 1, 1], [], []>} : vector<128x128xbf16>, vector<128x128xbf16>, vector<128x128xf32> -> vector<128x128xf32>
    %18 = arith.addf %12, %17 : vector<128x128xf32>
    %c0_22 = arith.constant 0 : index
    %c6 = arith.constant 6 : index
    %c0_23 = arith.constant 0 : index
    %19 = vector.load %arg5[%c0_22, %c6, %c0_23] : memref<2x136x128xbf16, #tpu.memory_space<vmem>>, vector<1x128x128xbf16>
    %20 = vector.shape_cast %19 : vector<1x128x128xbf16> to vector<128x128xbf16>
    %c2 = arith.constant 2 : index
    %c0_24 = arith.constant 0 : index
    %c0_25 = arith.constant 0 : index
    %21 = vector.load %arg1[%c2, %c0_24, %c0_25] : memref<5x128x128xbf16, #tpu.memory_space<vmem>>, vector<1x128x128xbf16>
    %22 = vector.shape_cast %21 : vector<1x128x128xbf16> to vector<128x128xbf16>
    %cst_26 = arith.constant dense<0.000000e+00> : vector<128x128xf32>
    %23 = tpu.matmul %20, %22, %cst_26 {dimension_numbers = #tpu.dot_dimension_numbers<[1], [0], [0], [1], [0, 0, 1, 1], [], []>} : vector<128x128xbf16>, vector<128x128xbf16>, vector<128x128xf32> -> vector<128x128xf32>
    %24 = arith.addf %18, %23 : vector<128x128xf32>
    %c0_27 = arith.constant 0 : index
    %c5 = arith.constant 5 : index
    %c0_28 = arith.constant 0 : index
    %25 = vector.load %arg5[%c0_27, %c5, %c0_28] : memref<2x136x128xbf16, #tpu.memory_space<vmem>>, vector<1x128x128xbf16>
    %26 = vector.shape_cast %25 : vector<1x128x128xbf16> to vector<128x128xbf16>
    %c3 = arith.constant 3 : index
    %c0_29 = arith.constant 0 : index
    %c0_30 = arith.constant 0 : index
    %27 = vector.load %arg1[%c3, %c0_29, %c0_30] : memref<5x128x128xbf16, #tpu.memory_space<vmem>>, vector<1x128x128xbf16>
    %28 = vector.shape_cast %27 : vector<1x128x128xbf16> to vector<128x128xbf16>
    %cst_31 = arith.constant dense<0.000000e+00> : vector<128x128xf32>
    %29 = tpu.matmul %26, %28, %cst_31 {dimension_numbers = #tpu.dot_dimension_numbers<[1], [0], [0], [1], [0, 0, 1, 1], [], []>} : vector<128x128xbf16>, vector<128x128xbf16>, vector<128x128xf32> -> vector<128x128xf32>
    %30 = arith.addf %24, %29 : vector<128x128xf32>
    %c0_32 = arith.constant 0 : index
    %c4 = arith.constant 4 : index
    %c0_33 = arith.constant 0 : index
    %31 = vector.load %arg5[%c0_32, %c4, %c0_33] : memref<2x136x128xbf16, #tpu.memory_space<vmem>>, vector<1x128x128xbf16>
    %32 = vector.shape_cast %31 : vector<1x128x128xbf16> to vector<128x128xbf16>
    %c4_34 = arith.constant 4 : index
    %c0_35 = arith.constant 0 : index
    %c0_36 = arith.constant 0 : index
    %33 = vector.load %arg1[%c4_34, %c0_35, %c0_36] : memref<5x128x128xbf16, #tpu.memory_space<vmem>>, vector<1x128x128xbf16>
    %34 = vector.shape_cast %33 : vector<1x128x128xbf16> to vector<128x128xbf16>
    %cst_37 = arith.constant dense<0.000000e+00> : vector<128x128xf32>
    %35 = tpu.matmul %32, %34, %cst_37 {dimension_numbers = #tpu.dot_dimension_numbers<[1], [0], [0], [1], [0, 0, 1, 1], [], []>} : vector<128x128xbf16>, vector<128x128xbf16>, vector<128x128xf32> -> vector<128x128xf32>
    %36 = arith.addf %30, %35 : vector<128x128xf32>
    %c0_38 = arith.constant 0 : index
    %c0_39 = arith.constant 0 : index
    %c0_40 = arith.constant 0 : index
    %37 = vector.load %arg2[%c0_38, %c0_39, %c0_40] : memref<2x128x128xf32, #tpu.memory_space<vmem>>, vector<1x128x128xf32>
    %38 = vector.shape_cast %37 : vector<1x128x128xf32> to vector<128x128xf32>
    %cst_41 = arith.constant 4.000000e-01 : f32
    %39 = vector.broadcast %cst_41 : f32 to vector<128x128xf32>
    %40 = arith.mulf %39, %38 : vector<128x128xf32>
    %cst_42 = arith.constant 3.300000e-01 : f32
    %41 = vector.broadcast %cst_42 : f32 to vector<128x128xf32>
    %42 = arith.mulf %41, %36 : vector<128x128xf32>
    %43 = arith.addf %40, %42 : vector<128x128xf32>
    %c0_43 = arith.constant 0 : index
    %c0_44 = arith.constant 0 : index
    %c0_45 = arith.constant 0 : index
    %44 = vector.load %arg4[%c0_43, %c0_44, %c0_45] : memref<2x128x128xf32, #tpu.memory_space<vmem>>, vector<1x128x128xf32>
    %45 = vector.shape_cast %44 : vector<1x128x128xf32> to vector<128x128xf32>
    %46 = vector.shape_cast %43 : vector<128x128xf32> to vector<1x128x128xf32>
    tpu.vector_store %arg4[%c0_43, %c0_44, %c0_45], %46 {strides = array<i32>} : memref<2x128x128xf32, #tpu.memory_space<vmem>>, vector<1x128x128xf32>,
    %cst_46 = arith.constant 0.000000e+00 : f32
    %47 = vector.broadcast %cst_46 : f32 to vector<128x128xf32>
    %c1_47 = arith.constant 1 : index
    %c8_48 = arith.constant 8 : index
    %c0_49 = arith.constant 0 : index
    %48 = vector.load %arg5[%c1_47, %c8_48, %c0_49] : memref<2x136x128xbf16, #tpu.memory_space<vmem>>, vector<1x128x128xbf16>
    %49 = vector.shape_cast %48 : vector<1x128x128xbf16> to vector<128x128xbf16>
    %c0_50 = arith.constant 0 : index
    %c0_51 = arith.constant 0 : index
    %c0_52 = arith.constant 0 : index
    %50 = vector.load %arg1[%c0_50, %c0_51, %c0_52] : memref<5x128x128xbf16, #tpu.memory_space<vmem>>, vector<1x128x128xbf16>
    %51 = vector.shape_cast %50 : vector<1x128x128xbf16> to vector<128x128xbf16>
    %cst_53 = arith.constant dense<0.000000e+00> : vector<128x128xf32>
    %52 = tpu.matmul %49, %51, %cst_53 {dimension_numbers = #tpu.dot_dimension_numbers<[1], [0], [0], [1], [0, 0, 1, 1], [], []>} : vector<128x128xbf16>, vector<128x128xbf16>, vector<128x128xf32> -> vector<128x128xf32>
    %53 = arith.addf %47, %52 : vector<128x128xf32>
    %c1_54 = arith.constant 1 : index
    %c7_55 = arith.constant 7 : index
    %c0_56 = arith.constant 0 : index
    %54 = vector.load %arg5[%c1_54, %c7_55, %c0_56] : memref<2x136x128xbf16, #tpu.memory_space<vmem>>, vector<1x128x128xbf16>
    %55 = vector.shape_cast %54 : vector<1x128x128xbf16> to vector<128x128xbf16>
    %c1_57 = arith.constant 1 : index
    %c0_58 = arith.constant 0 : index
    %c0_59 = arith.constant 0 : index
    %56 = vector.load %arg1[%c1_57, %c0_58, %c0_59] : memref<5x128x128xbf16, #tpu.memory_space<vmem>>, vector<1x128x128xbf16>
    %57 = vector.shape_cast %56 : vector<1x128x128xbf16> to vector<128x128xbf16>
    %cst_60 = arith.constant dense<0.000000e+00> : vector<128x128xf32>
    %58 = tpu.matmul %55, %57, %cst_60 {dimension_numbers = #tpu.dot_dimension_numbers<[1], [0], [0], [1], [0, 0, 1, 1], [], []>} : vector<128x128xbf16>, vector<128x128xbf16>, vector<128x128xf32> -> vector<128x128xf32>
    %59 = arith.addf %53, %58 : vector<128x128xf32>
    %c1_61 = arith.constant 1 : index
    %c6_62 = arith.constant 6 : index
    %c0_63 = arith.constant 0 : index
    %60 = vector.load %arg5[%c1_61, %c6_62, %c0_63] : memref<2x136x128xbf16, #tpu.memory_space<vmem>>, vector<1x128x128xbf16>
    %61 = vector.shape_cast %60 : vector<1x128x128xbf16> to vector<128x128xbf16>
    %c2_64 = arith.constant 2 : index
    %c0_65 = arith.constant 0 : index
    %c0_66 = arith.constant 0 : index
    %62 = vector.load %arg1[%c2_64, %c0_65, %c0_66] : memref<5x128x128xbf16, #tpu.memory_space<vmem>>, vector<1x128x128xbf16>
    %63 = vector.shape_cast %62 : vector<1x128x128xbf16> to vector<128x128xbf16>
    %cst_67 = arith.constant dense<0.000000e+00> : vector<128x128xf32>
    %64 = tpu.matmul %61, %63, %cst_67 {dimension_numbers = #tpu.dot_dimension_numbers<[1], [0], [0], [1], [0, 0, 1, 1], [], []>} : vector<128x128xbf16>, vector<128x128xbf16>, vector<128x128xf32> -> vector<128x128xf32>
    %65 = arith.addf %59, %64 : vector<128x128xf32>
    %c1_68 = arith.constant 1 : index
    %c5_69 = arith.constant 5 : index
    %c0_70 = arith.constant 0 : index
    %66 = vector.load %arg5[%c1_68, %c5_69, %c0_70] : memref<2x136x128xbf16, #tpu.memory_space<vmem>>, vector<1x128x128xbf16>
    %67 = vector.shape_cast %66 : vector<1x128x128xbf16> to vector<128x128xbf16>
    %c3_71 = arith.constant 3 : index
    %c0_72 = arith.constant 0 : index
    %c0_73 = arith.constant 0 : index
    %68 = vector.load %arg1[%c3_71, %c0_72, %c0_73] : memref<5x128x128xbf16, #tpu.memory_space<vmem>>, vector<1x128x128xbf16>
    %69 = vector.shape_cast %68 : vector<1x128x128xbf16> to vector<128x128xbf16>
    %cst_74 = arith.constant dense<0.000000e+00> : vector<128x128xf32>
    %70 = tpu.matmul %67, %69, %cst_74 {dimension_numbers = #tpu.dot_dimension_numbers<[1], [0], [0], [1], [0, 0, 1, 1], [], []>} : vector<128x128xbf16>, vector<128x128xbf16>, vector<128x128xf32> -> vector<128x128xf32>
    %71 = arith.addf %65, %70 : vector<128x128xf32>
    %c1_75 = arith.constant 1 : index
    %c4_76 = arith.constant 4 : index
    %c0_77 = arith.constant 0 : index
    %72 = vector.load %arg5[%c1_75, %c4_76, %c0_77] : memref<2x136x128xbf16, #tpu.memory_space<vmem>>, vector<1x128x128xbf16>
    %73 = vector.shape_cast %72 : vector<1x128x128xbf16> to vector<128x128xbf16>
    %c4_78 = arith.constant 4 : index
    %c0_79 = arith.constant 0 : index
    %c0_80 = arith.constant 0 : index
    %74 = vector.load %arg1[%c4_78, %c0_79, %c0_80] : memref<5x128x128xbf16, #tpu.memory_space<vmem>>, vector<1x128x128xbf16>
    %75 = vector.shape_cast %74 : vector<1x128x128xbf16> to vector<128x128xbf16>
    %cst_81 = arith.constant dense<0.000000e+00> : vector<128x128xf32>
    %76 = tpu.matmul %73, %75, %cst_81 {dimension_numbers = #tpu.dot_dimension_numbers<[1], [0], [0], [1], [0, 0, 1, 1], [], []>} : vector<128x128xbf16>, vector<128x128xbf16>, vector<128x128xf32> -> vector<128x128xf32>
    %77 = arith.addf %71, %76 : vector<128x128xf32>
    %c1_82 = arith.constant 1 : index
    %c0_83 = arith.constant 0 : index
    %c0_84 = arith.constant 0 : index
    %78 = vector.load %arg2[%c1_82, %c0_83, %c0_84] : memref<2x128x128xf32, #tpu.memory_space<vmem>>, vector<1x128x128xf32>
    %79 = vector.shape_cast %78 : vector<1x128x128xf32> to vector<128x128xf32>
    %cst_85 = arith.constant 4.000000e-01 : f32
    %80 = vector.broadcast %cst_85 : f32 to vector<128x128xf32>
    %81 = arith.mulf %80, %79 : vector<128x128xf32>
    %cst_86 = arith.constant 3.300000e-01 : f32
    %82 = vector.broadcast %cst_86 : f32 to vector<128x128xf32>
    %83 = arith.mulf %82, %77 : vector<128x128xf32>
    %84 = arith.addf %81, %83 : vector<128x128xf32>
    %c1_87 = arith.constant 1 : index
    %c0_88 = arith.constant 0 : index
    %c0_89 = arith.constant 0 : index
    %85 = vector.load %arg4[%c1_87, %c0_88, %c0_89] : memref<2x128x128xf32, #tpu.memory_space<vmem>>, vector<1x128x128xf32>
    %86 = vector.shape_cast %85 : vector<1x128x128xf32> to vector<128x128xf32>
    %87 = vector.shape_cast %84 : vector<128x128xf32> to vector<1x128x128xf32>
    tpu.vector_store %arg4[%c1_87, %c0_88, %c0_89], %87 {strides = array<i32>} : memref<2x128x128xf32, #tpu.memory_space<vmem>>, vector<1x128x128xf32>,
    return
  }
  func.func @transform_0(%arg0: i32) -> (i32, i32, i32) {
    %c0_i32 = arith.constant 0 : i32
    %c0_i32_0 = arith.constant 0 : i32
    %c0_i32_1 = arith.constant 0 : i32
    %c0_i32_2 = arith.constant 0 : i32
    return %c0_i32, %c0_i32_0, %c0_i32_1 : i32, i32, i32
  }
  func.func @transform_1(%arg0: i32) -> (i32, i32, i32) {
    %c1_i32 = arith.constant 1 : i32
    %0 = arith.addi %arg0, %c1_i32 : i32
    %c0_i32 = arith.constant 0 : i32
    %c0_i32_0 = arith.constant 0 : i32
    %c0_i32_1 = arith.constant 0 : i32
    return %c0_i32, %0, %c0_i32_0 : i32, i32, i32
  }
  func.func @transform_2(%arg0: i32) -> (i32, i32, i32) {
    %c1_i32 = arith.constant 1 : i32
    %0 = arith.addi %arg0, %c1_i32 : i32
    %c16_i32 = arith.constant 16 : i32
    %1 = arith.muli %0, %c16_i32 : i32
    %c1_i32_0 = arith.constant 1 : i32
    %2 = arith.subi %1, %c1_i32_0 : i32
    %c0_i32 = arith.constant 0 : i32
    %c0_i32_1 = arith.constant 0 : i32
    %c0_i32_2 = arith.constant 0 : i32
    return %c0_i32, %2, %c0_i32_1 : i32, i32, i32
  }
  func.func @transform_3(%arg0: i32) -> (i32, i32, i32) {
    %c0_i32 = arith.constant 0 : i32
    %c0_i32_0 = arith.constant 0 : i32
    %c0_i32_1 = arith.constant 0 : i32
    return %c0_i32, %arg0, %c0_i32_0 : i32, i32, i32
  }
}

</mosaic_0001>

<llo_original>
// kernel: tpu_custom_call.1
$region0: #{tpu_custom_call.1}
  #allocation0 [shape = 'u32[]', space=smem, size = 0x4, offset = 0x4, fixed_abs, tag = 'smem constant byte address 0x4 - core index']
  #allocation1 [shape = 'u32[144,128]{1,0:T(1,128)}', space=vmem, size = 0x12000, scoped, tag = 'internal scratch']
  #allocation2 [shape = 'bf16[2,136,128]{2,1,0:T(8,128)(2,1)}', space=vmem, size = 0x11000, scoped, tag = 'scratch operand']
  #allocation10 [shape = 's32[]', space=sflag, size = 0x4, offset = 0, fixed_abs, tag = 'sflag constant byte address 0x0 - dummy sync flag']
  #allocation12 [shape = 's32[]', space=sflag, size = 0x4, offset = 0, fixed_abs, tag = 'sflag constant byte address 0x0 - dummy sync flag']
  %s0 = inlined_call_operand.hbm [shape: bf16[5,128,128], index: 0, kind: input, shape index: {}]
  %s1 = inlined_call_operand.hbm [shape: f32[2,512,128], index: 1, kind: input, shape index: {}]
  %s2 = inlined_call_operand.hbm [shape: f32[2,512,128], index: 2, kind: input, shape index: {}]
  %s3 = inlined_call_operand.hbm [shape: f32[2,384,128], index: 3, kind: output, shape index: {}]
  %s4 = sld [smem:[#allocation0]]
  $region57: #{tpu_custom_call.1} parent=0
    _
  %s6 = ssub.s32 1, %s4
  %s7 = scalar_select 0, %s6, %s4
  $region1: #{tpu_custom_call.1} parent=0
    #allocation3 [shape = 'u8[163840]{0}', space=vmem, size = 0x28000, scoped, tag = 'input window, operand 0, single buffered']
    #allocation4 [shape = 's32[2]{0}', space=sflag, size = 0x8, scoped, tag = 'scoped memory for tpu_custom_call.1']
    #allocation5 [shape = 's32[2]{0}', space=sflag, size = 0x8, scoped, tag = 'scoped memory for tpu_custom_call.1']
    #allocation6 [shape = 'u8[262144]{0}', space=vmem, size = 0x40000, scoped, tag = 'input window, operand 1']
    #allocation7 [shape = 's32[2]{0}', space=sflag, size = 0x8, scoped, tag = 'scoped memory for tpu_custom_call.1']
    #allocation8 [shape = 'u8[16384]{0}', space=vmem, size = 0x4000, scoped, tag = 'input window, operand 2']
    #allocation9 [shape = 'u8[262144]{0}', space=vmem, size = 0x40000, scoped, tag = 'output window, operand 0']
    %8 = vsyncpa [#allocation4], 0
    %9 = vsyncpa [#allocation7], 0
    %s10 = scalar_lea.sflag [#allocation7], 1
    %11 = vsyncpa %s10, 0
    %12 = vsyncpa [#allocation5], 0
    %s13 = scalar_lea.sflag [#allocation5], 1
    %14 = vsyncpa %s13, 0
    loop: start=0, step=1, limit=5
    $region2: #{tpu_custom_call.1} parent=1 // loop_pre_header
      _
    $region3: #{tpu_custom_call.1} parent=1 // loop_header
      %s16 = sphi 0, %s20
      %p17 = scmp.ge.s32.totalorder %s16, 5
      %s24 = sphi 0, %s24
      %s26 = sphi 0, %s24
      %s27 = sphi 0, %s26
      %s41 = sphi 0, %s27
      %s49 = sphi 0, %s51
      %s52 = sphi 0, %s49
      %s53 = sphi 0, %s52
      %s69 = sphi 0, %s53
      %s81 = sphi 0, %s83
      %s84 = sphi 0, %s81
      %s85 = sphi 0, %s84
      %s101 = sphi 0, %s85
      %s107 = sphi 0, %s109
      %s110 = sphi 0, %s107
      %s111 = sphi 0, %s110
      %s127 = sphi 0, %s111
    $region4: #{tpu_custom_call.1} parent=1 // loop_header_branch
      %19 = sbr.rel (%p17) target = $region8
    $region5: #{tpu_custom_call.1} parent=1 // loop_body
      %s21 = ssub.s32 %s16, 1
      %s22 = ssub.s32 %s16, 2
      %s23 = sadd.s32 %s16, 1
      %s25 = sadd.s32 %s24, 1
      %p28 = scmp.eq.s32.totalorder %s16, 2
      %p29 = scmp.ne.s32.totalorder %s24, %s26
      %p30 = scmp.eq.s32.totalorder %s16, 0
      %p31 = por %p29, %p30
      %p32 = scmp.ne.s32.totalorder %s24, %s26
      %p33 = scmp.eq.s32.totalorder %s21, 2
      %p34 = por %p32, %p33
      %p35 = scmp.ne.s32.totalorder %s26, %s27
      %p36 = scmp.eq.s32.totalorder %s21, 0
      %p37 = por %p35, %p36
      %p38 = scmp.ne.s32.totalorder %s26, %s27
      %p39 = scmp.eq.s32.totalorder %s22, 2
      %p40 = por %p38, %p39
      %p42 = scmp.ne.s32.totalorder %s27, %s41
      %p43 = scmp.eq.s32.totalorder %s22, 0
      %p44 = por %p42, %p43
      %s45 = sadd.s32 %s16, 1
      %s46 = sadd.s32 %s23, 1
      %s47 = ssub.s32 %s45, %s46
      %p48 = scmp.eq.s32.totalorder %s47, 0
      %s50 = sadd.s32 %s49, 1
      %s51 = scalar_select %p48, %s49, %s50
      %p54 = pneg %p48
      %p55 = scmp.eq.s32.totalorder %s16, 2
      %p56 = por %p54, %p55
      %p57 = scmp.ne.s32.totalorder %s49, %s52
      %p58 = scmp.eq.s32.totalorder %s16, 0
      %p59 = por %p57, %p58
      %p60 = scmp.ne.s32.totalorder %s49, %s52
      %p61 = scmp.eq.s32.totalorder %s21, 2
      %p62 = por %p60, %p61
      %p63 = scmp.ne.s32.totalorder %s52, %s53
      %p64 = scmp.eq.s32.totalorder %s21, 0
      %p65 = por %p63, %p64
      %p66 = scmp.ne.s32.totalorder %s52, %s53
      %p67 = scmp.eq.s32.totalorder %s22, 2
      %p68 = por %p66, %p67
      %p70 = scmp.ne.s32.totalorder %s53, %s69
      %p71 = scmp.eq.s32.totalorder %s22, 0
      %p72 = por %p70, %p71
      %s73 = sadd.s32 %s16, 1
      %s74 = smul.u32 %s73, 16
      %s75 = ssub.s32 %s74, 1
      %s76 = sadd.s32 %s23, 1
      %s77 = smul.u32 %s76, 16
      %s78 = ssub.s32 %s77, 1
      %s79 = ssub.s32 %s75, %s78
      %p80 = scmp.eq.s32.totalorder %s79, 0
      %s82 = sadd.s32 %s81, 1
      %s83 = scalar_select %p80, %s81, %s82
      %p86 = pneg %p80
      %p87 = scmp.eq.s32.totalorder %s16, 2
      %p88 = por %p86, %p87
      %p89 = scmp.ne.s32.totalorder %s81, %s84
      %p90 = scmp.eq.s32.totalorder %s16, 0
      %p91 = por %p89, %p90
      %p92 = scmp.ne.s32.totalorder %s81, %s84
      %p93 = scmp.eq.s32.totalorder %s21, 2
      %p94 = por %p92, %p93
      %p95 = scmp.ne.s32.totalorder %s84, %s85
      %p96 = scmp.eq.s32.totalorder %s21, 0
      %p97 = por %p95, %p96
      %p98 = scmp.ne.s32.totalorder %s84, %s85
      %p99 = scmp.eq.s32.totalorder %s22, 2
      %p100 = por %p98, %p99
      %p102 = scmp.ne.s32.totalorder %s85, %s101
      %p103 = scmp.eq.s32.totalorder %s22, 0
      %p104 = por %p102, %p103
      %s105 = ssub.s32 %s16, %s23
      %p106 = scmp.eq.s32.totalorder %s105, 0
      %s108 = sadd.s32 %s107, 1
      %s109 = scalar_select %p106, %s107, %s108
      %p112 = pneg %p106
      %p113 = scmp.eq.s32.totalorder %s16, 2
      %p114 = por %p112, %p113
      %p115 = scmp.ne.s32.totalorder %s107, %s110
      %p116 = scmp.eq.s32.totalorder %s16, 0
      %p117 = por %p115, %p116
      %p118 = scmp.ne.s32.totalorder %s107, %s110
      %p119 = scmp.eq.s32.totalorder %s21, 2
      %p120 = por %p118, %p119
      %p121 = scmp.ne.s32.totalorder %s110, %s111
      %p122 = scmp.eq.s32.totalorder %s21, 0
      %p123 = por %p121, %p122
      %p124 = scmp.ne.s32.totalorder %s110, %s111
      %p125 = scmp.eq.s32.totalorder %s22, 2
      %p126 = por %p124, %p125
      %p128 = scmp.ne.s32.totalorder %s111, %s127
      %p129 = scmp.eq.s32.totalorder %s22, 0
      %p130 = por %p128, %p129
      %p131 = scmp.le.s32.totalorder 1, %s16
      %p132 = scmp.lt.s32.totalorder %s16, 4
      %p133 = pnand %p131, %p132
      %p134 = pneg %p133
      // Predicated region
      $region9: #{tpu_custom_call.1} parent=5 // pred_check
        _
      $region10: #{tpu_custom_call.1} parent=5 // pred_check_branch
        %136 = sbr.rel (%p133) target = $region12
      $region11: #{tpu_custom_call.1} parent=5 // pred_region
        %s137 = ssub.s32 %s16, 1
        // Predicated region
        $region13: #{tpu_custom_call.1} parent=11 // pred_check
          %p138 = pneg %p37
        $region14: #{tpu_custom_call.1} parent=11 // pred_check_branch
          %140 = sbr.rel (%p138) target = $region16
        $region15: #{tpu_custom_call.1} parent=11 // pred_region
          %s142 = ssub.s32 5120, 5120
          %143 = vsyncadd [#allocation4], %s142
          %s144 = sshll.u32 [#allocation3], 4
          %s145 = int_to_ptr.vmem [resolvable:$true] %s144
          %150 = dma.hbm_to_vmem [thread:$0]  %s0, 5120, %s145, [#allocation4], 64, 64, 4
        $region16: #{tpu_custom_call.1} parent=11 // pred_fallthru
          _
      $region12: #{tpu_custom_call.1} parent=5 // pred_fallthru
        _
      %p151 = scmp.lt.s32.totalorder %s16, 3
      // Predicated region
      $region17: #{tpu_custom_call.1} parent=5 // pred_check
        %p152 = pneg %p151
      $region18: #{tpu_custom_call.1} parent=5 // pred_check_branch
        %154 = sbr.rel (%p152) target = $region20
      $region19: #{tpu_custom_call.1} parent=5 // pred_region
        // Predicated region
        $region21: #{tpu_custom_call.1} parent=19 // pred_check
          %p155 = pneg %p59
        $region22: #{tpu_custom_call.1} parent=19 // pred_check_branch
          %157 = sbr.rel (%p155) target = $region24
        $region23: #{tpu_custom_call.1} parent=19 // pred_region
          #allocation11 [shape = 'u32[6]{0}', space=smem, size = 0x18, scoped, tag = 'DMA stride descriptor']
          %s158 = sand.u32 %s16, 1
          %s159 = scalar_lea.sflag [#allocation7], %s158
          %s160 = sand.u32 %s49, 1
          %s161 = smul.addr %s160, 256
          %s162 = scalar_lea.vmem [#allocation6], %s161
          %s163 = sadd.s32 %s16, 1
          %s164 = smul.u32 16, %s163
          %s166 = ssub.s32 4096, 4096
          %167 = vsyncadd %s159, %s166
          %s168 = smul.addr %s164, 128
          %s169 = scalar_lea.hbm %s1, %s168
          %s171 = sshll.u32 1, 14
          %s172 = sxor.u32 4294967295, %s171
          %s174 = sld [smem:[#allocation0]]
          %s175 = sadd.s32 2, %s174
          %s177 = sshll.u32 7, 26
          %s178 = sxor.u32 4294967295, %s177
          %s179 = sand.u32 0, %s178
          %s180 = sshll.u32 %s175, 26
          %s181 = sor.u32 %s179, %s180
          %s182 = sshll.u32 %s162, 4
          %s183 = int_to_ptr.vmem [resolvable:$true] %s182
          %189 = sst [smem:[#allocation11]] 8192
          %s190 = scalar_lea.smem [#allocation11], 1
          %191 = sst [smem:[%s190]] 2048
          %s192 = scalar_lea.smem [#allocation11], 2
          %193 = sst [smem:[%s192]] 16
          %s194 = scalar_lea.smem [#allocation11], 3
          %195 = sst [smem:[%s194]] 128
          %s196 = scalar_lea.smem [#allocation11], 4
          %197 = sst [smem:[%s196]] 128
          %s198 = scalar_lea.smem [#allocation11], 5
          %199 = sst [smem:[%s198]] 8
          %201 = dma.general %s169, 4096, %s183, %s159, [#allocation10], [#allocation11], %s181, 0
        $region24: #{tpu_custom_call.1} parent=19 // pred_fallthru
          _
        // Predicated region
        $region25: #{tpu_custom_call.1} parent=19 // pred_check
          %p202 = pneg %p91
        $region26: #{tpu_custom_call.1} parent=19 // pred_check_branch
          %204 = sbr.rel (%p202) target = $region28
        $region27: #{tpu_custom_call.1} parent=19 // pred_region
          %s205 = sand.u32 %s16, 1
          %s206 = scalar_lea.sflag [#allocation7], %s205
          %s207 = sand.u32 %s81, 1
          %s208 = smul.addr %s207, 16
          %s209 = scalar_lea.vmem [#allocation8], %s208
          %s210 = sadd.s32 %s16, 1
          %s211 = smul.u32 %s210, 16
          %s212 = ssub.s32 %s211, 1
          %s214 = ssub.s32 256, 256
          %215 = vsyncadd %s206, %s214
          %s216 = smul.addr %s212, 128
          %s217 = scalar_lea.hbm %s2, %s216
          %s218 = sshll.u32 %s209, 4
          %s219 = int_to_ptr.vmem [resolvable:$true] %s218
          %224 = dma.hbm_to_vmem [thread:$0]  %s217, 256, %s219, %s206, 8192, 128, 8
        $region28: #{tpu_custom_call.1} parent=19 // pred_fallthru
          _
      $region20: #{tpu_custom_call.1} parent=5 // pred_fallthru
        _
      %p225 = scmp.le.s32.totalorder 1, %s16
      %p226 = scmp.lt.s32.totalorder %s16, 4
      %p227 = pnand %p225, %p226
      %p228 = pneg %p227
      // Predicated region
      $region29: #{tpu_custom_call.1} parent=5 // pred_check
        _
      $region30: #{tpu_custom_call.1} parent=5 // pred_check_branch
        %230 = sbr.rel (%p227) target = $region32
      $region31: #{tpu_custom_call.1} parent=5 // pred_region
        %s231 = ssub.s32 %s16, 1
        // Predicated region
        $region33: #{tpu_custom_call.1} parent=31 // pred_check
          %p232 = pneg %p37
        $region34: #{tpu_custom_call.1} parent=31 // pred_check_branch
          %234 = sbr.rel (%p232) target = $region36
        $region35: #{tpu_custom_call.1} parent=31 // pred_region
          %235 = dma.done [#allocation4], 5120
        $region36: #{tpu_custom_call.1} parent=31 // pred_fallthru
          _
        %s236 = sand.u32 %s21, 1
        %s237 = scalar_lea.sflag [#allocation7], %s236
        %s238 = sand.u32 %s52, 1
        %s239 = smul.addr %s238, 256
        %s240 = scalar_lea.vmem [#allocation6], %s239
        // Predicated region
        $region37: #{tpu_custom_call.1} parent=31 // pred_check
          %p241 = pneg %p65
        $region38: #{tpu_custom_call.1} parent=31 // pred_check_branch
          %243 = sbr.rel (%p241) target = $region40
        $region39: #{tpu_custom_call.1} parent=31 // pred_region
          %244 = dma.done %s237, 4096
        $region40: #{tpu_custom_call.1} parent=31 // pred_fallthru
          _
        %s245 = sand.u32 %s21, 1
        %s246 = scalar_lea.sflag [#allocation7], %s245
        %s247 = sand.u32 %s84, 1
        %s248 = smul.addr %s247, 16
        %s249 = scalar_lea.vmem [#allocation8], %s248
        // Predicated region
        $region41: #{tpu_custom_call.1} parent=31 // pred_check
          %p250 = pneg %p97
        $region42: #{tpu_custom_call.1} parent=31 // pred_check_branch
          %252 = sbr.rel (%p250) target = $region44
        $region43: #{tpu_custom_call.1} parent=31 // pred_region
          %253 = dma.done %s246, 256
        $region44: #{tpu_custom_call.1} parent=31 // pred_fallthru
          _
        %p254 = pneg %p37
        %p255 = pneg %p34
        %s256 = sand.u32 %s21, 1
        %s257 = scalar_lea.sflag [#allocation7], %s256
        %s258 = sand.u32 %s52, 1
        %s259 = smul.addr %s258, 256
        %s260 = scalar_lea.vmem [#allocation6], %s259
        %p261 = pneg %p65
        %p262 = pneg %p62
        %s263 = sand.u32 %s21, 1
        %s264 = scalar_lea.sflag [#allocation7], %s263
        %s265 = sand.u32 %s84, 1
        %s266 = smul.addr %s265, 16
        %s267 = scalar_lea.vmem [#allocation8], %s266
        %p268 = pneg %p97
        %p269 = pneg %p94
        %p270 = pneg %p123
        %p271 = pneg %p120
        %s272 = sand.u32 %s110, 1
        %s273 = scalar_lea.sflag [#allocation5], %s272
        %s274 = sand.u32 %s110, 1
        %s275 = smul.addr %s274, 256
        %s276 = scalar_lea.vmem [#allocation9], %s275
        %s277 = sadd.s32 %s21, 1
        %s278 = smul.u32 16, %s277
        %s279 = sadd.s32 %s21, 1
        %s280 = smul.u32 %s279, 16
        %s281 = ssub.s32 %s280, 1
        %s282 = smul.u32 16, %s21
        %v284 = vld [vmem:[%s249] sm:$0xff]
        %v285 = vld [vmem:[%s249 + $0x8] sm:$0xff]
        %v286 = vpack.c.bf16 %v284, %v284
        %v287 = vpack.c.bf16 %v285, %v285
        %288 = vst [vmem:[#allocation2] sm:$0xf] %v286
        %289 = vst [vmem:[#allocation2 + $0x44] sm:$0xf] %v287
        %v290 = vld [vmem:[%s240] sm:$0xff]
        %v291 = vld [vmem:[%s240 + $0x8] sm:$0xff]
        %v292 = vld [vmem:[%s240 + $0x10] sm:$0xff]
        %v293 = vld [vmem:[%s240 + $0x18] sm:$0xff]
        %v294 = vld [vmem:[%s240 + $0x20] sm:$0xff]
        %v295 = vld [vmem:[%s240 + $0x28] sm:$0xff]
        %v296 = vld [vmem:[%s240 + $0x30] sm:$0xff]
        %v297 = vld [vmem:[%s240 + $0x38] sm:$0xff]
        %v298 = vld [vmem:[%s240 + $0x40] sm:$0xff]
        %v299 = vld [vmem:[%s240 + $0x48] sm:$0xff]
        %v300 = vld [vmem:[%s240 + $0x50] sm:$0xff]
        %v301 = vld [vmem:[%s240 + $0x58] sm:$0xff]
        %v302 = vld [vmem:[%s240 + $0x60] sm:$0xff]
        %v303 = vld [vmem:[%s240 + $0x68] sm:$0xff]
        %v304 = vld [vmem:[%s240 + $0x70] sm:$0xff]
        %v305 = vld [vmem:[%s240 + $0x78] sm:$0xff]
        %v306 = vld [vmem:[%s240 + $0x80] sm:$0xff]
        %v307 = vld [vmem:[%s240 + $0x88] sm:$0xff]
        %v308 = vld [vmem:[%s240 + $0x90] sm:$0xff]
        %v309 = vld [vmem:[%s240 + $0x98] sm:$0xff]
        %v310 = vld [vmem:[%s240 + $0xa0] sm:$0xff]
        %v311 = vld [vmem:[%s240 + $0xa8] sm:$0xff]
        %v312 = vld [vmem:[%s240 + $0xb0] sm:$0xff]
        %v313 = vld [vmem:[%s240 + $0xb8] sm:$0xff]
        %v314 = vld [vmem:[%s240 + $0xc0] sm:$0xff]
        %v315 = vld [vmem:[%s240 + $0xc8] sm:$0xff]
        %v316 = vld [vmem:[%s240 + $0xd0] sm:$0xff]
        %v317 = vld [vmem:[%s240 + $0xd8] sm:$0xff]
        %v318 = vld [vmem:[%s240 + $0xe0] sm:$0xff]
        %v319 = vld [vmem:[%s240 + $0xe8] sm:$0xff]
        %v320 = vld [vmem:[%s240 + $0xf0] sm:$0xff]
        %v321 = vld [vmem:[%s240 + $0xf8] sm:$0xff]
        %v322 = vpack.c.bf16 %v291, %v290
        %v323 = vpack.c.bf16 %v293, %v292
        %v324 = vpack.c.bf16 %v295, %v294
        %v325 = vpack.c.bf16 %v297, %v296
        %v326 = vpack.c.bf16 %v299, %v298
        %v327 = vpack.c.bf16 %v301, %v300
        %v328 = vpack.c.bf16 %v303, %v302
        %v329 = vpack.c.bf16 %v305, %v304
        %v330 = vpack.c.bf16 %v307, %v306
        %v331 = vpack.c.bf16 %v309, %v308
        %v332 = vpack.c.bf16 %v311, %v310
        %v333 = vpack.c.bf16 %v313, %v312
        %v334 = vpack.c.bf16 %v315, %v314
        %v335 = vpack.c.bf16 %v317, %v316
        %v336 = vpack.c.bf16 %v319, %v318
        %v337 = vpack.c.bf16 %v321, %v320
        %v354 = vunpack.c.l.b16 %v322
        %v355 = vunpack.c.h.b16 %v322
        %v356 = vunpack.c.l.b16 %v323
        %v357 = vunpack.c.h.b16 %v323
        %v358 = vunpack.c.l.b16 %v324
        %v359 = vunpack.c.h.b16 %v324
        %v360 = vunpack.c.l.b16 %v325
        %v361 = vunpack.c.h.b16 %v325
        %v362 = vunpack.c.l.b16 %v326
        %v363 = vunpack.c.h.b16 %v326
        %v364 = vunpack.c.l.b16 %v327
        %v365 = vunpack.c.h.b16 %v327
        %v366 = vunpack.c.l.b16 %v328
        %v367 = vunpack.c.h.b16 %v328
        %v368 = vunpack.c.l.b16 %v329
        %v369 = vunpack.c.h.b16 %v329
        %v370 = vunpack.c.l.b16 %v330
        %v371 = vunpack.c.h.b16 %v330
        %v372 = vunpack.c.l.b16 %v331
        %v373 = vunpack.c.h.b16 %v331
        %v374 = vunpack.c.l.b16 %v332
        %v375 = vunpack.c.h.b16 %v332
        %v376 = vunpack.c.l.b16 %v333
        %v377 = vunpack.c.h.b16 %v333
        %v378 = vunpack.c.l.b16 %v334
        %v379 = vunpack.c.h.b16 %v334
        %v380 = vunpack.c.l.b16 %v335
        %v381 = vunpack.c.h.b16 %v335
        %v382 = vunpack.c.l.b16 %v336
        %v383 = vunpack.c.h.b16 %v336
        %v384 = vunpack.c.l.b16 %v337
        %v385 = vunpack.c.h.b16 %v337
        %v386 = vpack.c.b16 %v354, %v354
        %v387 = vpack.c.b16 %v355, %v355
        %v388 = vpack.c.b16 %v356, %v356
        %v389 = vpack.c.b16 %v357, %v357
        %v390 = vpack.c.b16 %v358, %v358
        %v391 = vpack.c.b16 %v359, %v359
        %v392 = vpack.c.b16 %v360, %v360
        %v393 = vpack.c.b16 %v361, %v361
        %v394 = vpack.c.b16 %v362, %v362
        %v395 = vpack.c.b16 %v363, %v363
        %v396 = vpack.c.b16 %v364, %v364
        %v397 = vpack.c.b16 %v365, %v365
        %v398 = vpack.c.b16 %v366, %v366
        %v399 = vpack.c.b16 %v367, %v367
        %v400 = vpack.c.b16 %v368, %v368
        %v401 = vpack.c.b16 %v369, %v369
        %v402 = vpack.c.b16 %v370, %v370
        %v403 = vpack.c.b16 %v371, %v371
        %v404 = vpack.c.b16 %v372, %v372
        %v405 = vpack.c.b16 %v373, %v373
        %v406 = vpack.c.b16 %v374, %v374
        %v407 = vpack.c.b16 %v375, %v375
        %v408 = vpack.c.b16 %v376, %v376
        %v409 = vpack.c.b16 %v377, %v377
        %v410 = vpack.c.b16 %v378, %v378
        %v411 = vpack.c.b16 %v379, %v379
        %v412 = vpack.c.b16 %v380, %v380
        %v413 = vpack.c.b16 %v381, %v381
        %v414 = vpack.c.b16 %v382, %v382
        %v415 = vpack.c.b16 %v383, %v383
        %v416 = vpack.c.b16 %v384, %v384
        %v417 = vpack.c.b16 %v385, %v385
        %450 = vst [vmem:[#allocation2 + $0x4] sm:$0xf] %v386
        %451 = vst [vmem:[#allocation2 + $0x8] sm:$0xf] %v387
        %452 = vst [vmem:[#allocation2 + $0xc] sm:$0xf] %v388
        %453 = vst [vmem:[#allocation2 + $0x10] sm:$0xf] %v389
        %454 = vst [vmem:[#allocation2 + $0x14] sm:$0xf] %v390
        %455 = vst [vmem:[#allocation2 + $0x18] sm:$0xf] %v391
        %456 = vst [vmem:[#allocation2 + $0x1c] sm:$0xf] %v392
        %457 = vst [vmem:[#allocation2 + $0x20] sm:$0xf] %v393
        %458 = vst [vmem:[#allocation2 + $0x24] sm:$0xf] %v394
        %459 = vst [vmem:[#allocation2 + $0x28] sm:$0xf] %v395
        %460 = vst [vmem:[#allocation2 + $0x2c] sm:$0xf] %v396
        %461 = vst [vmem:[#allocation2 + $0x30] sm:$0xf] %v397
        %462 = vst [vmem:[#allocation2 + $0x34] sm:$0xf] %v398
        %463 = vst [vmem:[#allocation2 + $0x38] sm:$0xf] %v399
        %464 = vst [vmem:[#allocation2 + $0x3c] sm:$0xf] %v400
        %465 = vst [vmem:[#allocation2 + $0x40] sm:$0xf] %v401
        %466 = vst [vmem:[#allocation2 + $0x48] sm:$0xf] %v402
        %467 = vst [vmem:[#allocation2 + $0x4c] sm:$0xf] %v403
        %468 = vst [vmem:[#allocation2 + $0x50] sm:$0xf] %v404
        %469 = vst [vmem:[#allocation2 + $0x54] sm:$0xf] %v405
        %470 = vst [vmem:[#allocation2 + $0x58] sm:$0xf] %v406
        %471 = vst [vmem:[#allocation2 + $0x5c] sm:$0xf] %v407
        %472 = vst [vmem:[#allocation2 + $0x60] sm:$0xf] %v408
        %473 = vst [vmem:[#allocation2 + $0x64] sm:$0xf] %v409
        %474 = vst [vmem:[#allocation2 + $0x68] sm:$0xf] %v410
        %475 = vst [vmem:[#allocation2 + $0x6c] sm:$0xf] %v411
        %476 = vst [vmem:[#allocation2 + $0x70] sm:$0xf] %v412
        %477 = vst [vmem:[#allocation2 + $0x74] sm:$0xf] %v413
        %478 = vst [vmem:[#allocation2 + $0x78] sm:$0xf] %v414
        %479 = vst [vmem:[#allocation2 + $0x7c] sm:$0xf] %v415
        %480 = vst [vmem:[#allocation2 + $0x80] sm:$0xf] %v416
        %481 = vst [vmem:[#allocation2 + $0x84] sm:$0xf] %v417
        %v482 = vld [vmem:[#allocation2 + $0x4] sm:$0xf]
        %v483 = vld [vmem:[#allocation2 + $0x8] sm:$0xf]
        %v484 = vld [vmem:[#allocation2 + $0xc] sm:$0xf]
        %v485 = vld [vmem:[#allocation2 + $0x10] sm:$0xf]
        %v486 = vld [vmem:[#allocation2 + $0x14] sm:$0xf]
        %v487 = vld [vmem:[#allocation2 + $0x18] sm:$0xf]
        %v488 = vld [vmem:[#allocation2 + $0x1c] sm:$0xf]
        %v489 = vld [vmem:[#allocation2 + $0x20] sm:$0xf]
        %v490 = vld [vmem:[#allocation2 + $0x24] sm:$0xf]
        %v491 = vld [vmem:[#allocation2 + $0x28] sm:$0xf]
        %v492 = vld [vmem:[#allocation2 + $0x2c] sm:$0xf]
        %v493 = vld [vmem:[#allocation2 + $0x30] sm:$0xf]
        %v494 = vld [vmem:[#allocation2 + $0x34] sm:$0xf]
        %v495 = vld [vmem:[#allocation2 + $0x38] sm:$0xf]
        %v496 = vld [vmem:[#allocation2 + $0x3c] sm:$0xf]
        %v497 = vld [vmem:[#allocation2 + $0x40] sm:$0xf]
        %v498 = vld [vmem:[#allocation3] sm:$0xf]
        %v499 = vld [vmem:[#allocation3 + $0x4] sm:$0xf]
        %v500 = vld [vmem:[#allocation3 + $0x8] sm:$0xf]
        %v501 = vld [vmem:[#allocation3 + $0xc] sm:$0xf]
        %v502 = vld [vmem:[#allocation3 + $0x10] sm:$0xf]
        %v503 = vld [vmem:[#allocation3 + $0x14] sm:$0xf]
        %v504 = vld [vmem:[#allocation3 + $0x18] sm:$0xf]
        %v505 = vld [vmem:[#allocation3 + $0x1c] sm:$0xf]
        %v506 = vld [vmem:[#allocation3 + $0x20] sm:$0xf]
        %v507 = vld [vmem:[#allocation3 + $0x24] sm:$0xf]
        %v508 = vld [vmem:[#allocation3 + $0x28] sm:$0xf]
        %v509 = vld [vmem:[#allocation3 + $0x2c] sm:$0xf]
        %v510 = vld [vmem:[#allocation3 + $0x30] sm:$0xf]
        %v511 = vld [vmem:[#allocation3 + $0x34] sm:$0xf]
        %v512 = vld [vmem:[#allocation3 + $0x38] sm:$0xf]
        %v513 = vld [vmem:[#allocation3 + $0x3c] sm:$0xf]
        %v514 = vld [vmem:[#allocation2] sm:$0x8]
        %s515 = scalar_lea.vmem [#allocation3], 64
        %v516 = vld [vmem:[%s515] sm:$0xf]
        %v517 = vld [vmem:[%s515 + $0x4] sm:$0xf]
        %v518 = vld [vmem:[%s515 + $0x8] sm:$0xf]
        %v519 = vld [vmem:[%s515 + $0xc] sm:$0xf]
        %v520 = vld [vmem:[%s515 + $0x10] sm:$0xf]
        %v521 = vld [vmem:[%s515 + $0x14] sm:$0xf]
        %v522 = vld [vmem:[%s515 + $0x18] sm:$0xf]
        %v523 = vld [vmem:[%s515 + $0x1c] sm:$0xf]
        %v524 = vld [vmem:[%s515 + $0x20] sm:$0xf]
        %v525 = vld [vmem:[%s515 + $0x24] sm:$0xf]
        %v526 = vld [vmem:[%s515 + $0x28] sm:$0xf]
        %v527 = vld [vmem:[%s515 + $0x2c] sm:$0xf]
        %v528 = vld [vmem:[%s515 + $0x30] sm:$0xf]
        %v529 = vld [vmem:[%s515 + $0x34] sm:$0xf]
        %v530 = vld [vmem:[%s515 + $0x38] sm:$0xf]
        %v531 = vld [vmem:[%s515 + $0x3c] sm:$0xf]
        %v549 = vunpack.c.l.b16 %v514
        %v550 = vunpack.c.l.b16 %v482
        %v551 = vunpack.c.l.b16 %v483
        %v552 = vunpack.c.l.b16 %v484
        %v553 = vunpack.c.l.b16 %v485
        %v554 = vunpack.c.l.b16 %v486
        %v555 = vunpack.c.l.b16 %v487
        %v556 = vunpack.c.l.b16 %v488
        %v557 = vunpack.c.l.b16 %v489
        %v558 = vunpack.c.l.b16 %v490
        %v559 = vunpack.c.l.b16 %v491
        %v560 = vunpack.c.l.b16 %v492
        %v561 = vunpack.c.l.b16 %v493
        %v562 = vunpack.c.l.b16 %v494
        %v563 = vunpack.c.l.b16 %v495
        %v564 = vunpack.c.l.b16 %v496
        %v565 = vunpack.c.l.b16 %v497
        %v566 = vpack.c.b16 %v550, %v549
        %v567 = vpack.c.b16 %v552, %v551
        %v568 = vpack.c.b16 %v554, %v553
        %v569 = vpack.c.b16 %v556, %v555
        %v570 = vpack.c.b16 %v558, %v557
        %v571 = vpack.c.b16 %v560, %v559
        %v572 = vpack.c.b16 %v562, %v561
        %v573 = vpack.c.b16 %v564, %v563
        %v574 = vpack.c.b16 %v565, %v565
        %vm575 = vsmask.f32 4352
        %v577 = vshrl.u32 %v566, 16
        %v579 = vrot.slane %v577, 3
        %v580 = vshll.u32 %v566, 16
        %v582 = vrot.slane %v580, 4
        %v583 = vor.u32 %v579, %v582
        %v585 = vshrl.u32 %v567, 16
        %v587 = vrot.slane %v585, 3
        %v588 = vshll.u32 %v567, 16
        %v590 = vrot.slane %v588, 4
        %v591 = vor.u32 %v587, %v590
        %v592 = vsel %vm575, %v583, %v591
        %v594 = vshrl.u32 %v568, 16
        %v596 = vrot.slane %v594, 3
        %v597 = vshll.u32 %v568, 16
        %v599 = vrot.slane %v597, 4
        %v600 = vor.u32 %v596, %v599
        %v601 = vsel %vm575, %v591, %v600
        %v603 = vshrl.u32 %v569, 16
        %v605 = vrot.slane %v603, 3
        %v606 = vshll.u32 %v569, 16
        %v608 = vrot.slane %v606, 4
        %v609 = vor.u32 %v605, %v608
        %v610 = vsel %vm575, %v600, %v609
        %v612 = vshrl.u32 %v570, 16
        %v614 = vrot.slane %v612, 3
        %v615 = vshll.u32 %v570, 16
        %v617 = vrot.slane %v615, 4
        %v618 = vor.u32 %v614, %v617
        %v619 = vsel %vm575, %v609, %v618
        %v621 = vshrl.u32 %v571, 16
        %v623 = vrot.slane %v621, 3
        %v624 = vshll.u32 %v571, 16
        %v626 = vrot.slane %v624, 4
        %v627 = vor.u32 %v623, %v626
        %v628 = vsel %vm575, %v618, %v627
        %v630 = vshrl.u32 %v572, 16
        %v632 = vrot.slane %v630, 3
        %v633 = vshll.u32 %v572, 16
        %v635 = vrot.slane %v633, 4
        %v636 = vor.u32 %v632, %v635
        %v637 = vsel %vm575, %v627, %v636
        %v639 = vshrl.u32 %v573, 16
        %v641 = vrot.slane %v639, 3
        %v642 = vshll.u32 %v573, 16
        %v644 = vrot.slane %v642, 4
        %v645 = vor.u32 %v641, %v644
        %v646 = vsel %vm575, %v636, %v645
        %v648 = vshrl.u32 %v574, 16
        %v650 = vrot.slane %v648, 3
        %v651 = vshll.u32 %v574, 16
        %v653 = vrot.slane %v651, 4
        %v654 = vor.u32 %v650, %v653
        %v655 = vsel %vm575, %v645, %v654
        %v680 = vunpack.c.l.b16 %v516
        %v681 = vunpack.c.l.b16 %v517
        %v682 = vunpack.c.l.b16 %v518
        %v683 = vunpack.c.l.b16 %v519
        %v684 = vunpack.c.l.b16 %v520
        %v685 = vunpack.c.l.b16 %v521
        %v686 = vunpack.c.l.b16 %v522
        %v687 = vunpack.c.l.b16 %v523
        %v688 = vunpack.c.l.b16 %v524
        %v689 = vunpack.c.l.b16 %v525
        %v690 = vunpack.c.l.b16 %v526
        %v691 = vunpack.c.l.b16 %v527
        %v692 = vunpack.c.l.b16 %v528
        %v693 = vunpack.c.l.b16 %v529
        %v694 = vunpack.c.l.b16 %v530
        %v695 = vunpack.c.l.b16 %v531
        %v696 = vpack.c.b16 %v681, %v680
        %v697 = vpack.c.b16 %v683, %v682
        %v698 = vpack.c.b16 %v685, %v684
        %v699 = vpack.c.b16 %v687, %v686
        %v700 = vpack.c.b16 %v689, %v688
        %v701 = vpack.c.b16 %v691, %v690
        %v702 = vpack.c.b16 %v693, %v692
        %v703 = vpack.c.b16 %v695, %v694
        %712 = vmatprep.subr.bf16.mxu0 0
        %713 = vmatpush1.bf16.msra.mxu0 %v696
        %714 = vmatprep.subr.bf16.mxu0 0
        %715 = vmatpush1.bf16.msra.mxu0 %v697
        %716 = vmatprep.subr.bf16.mxu0 0
        %717 = vmatpush1.bf16.msra.mxu0 %v698
        %718 = vmatprep.subr.bf16.mxu0 0
        %719 = vmatpush1.bf16.msra.mxu0 %v699
        %720 = vmatprep.subr.bf16.mxu0 0
        %721 = vmatpush1.bf16.msra.mxu0 %v700
        %722 = vmatprep.subr.bf16.mxu0 0
        %723 = vmatpush1.bf16.msra.mxu0 %v701
        %724 = vmatprep.subr.bf16.mxu0 0
        %725 = vmatpush1.bf16.msra.mxu0 %v702
        %726 = vmatprep.subr.bf16.mxu0 0
        %727 = vmatpush1.bf16.msra.mxu0 %v703
        %728 = vmatprep.subr.bf16.mxu0 0
        %729 = vmatpush1.bf16.msra.mxu0 0
        %730 = vmatprep.subr.bf16.mxu0 0
        %731 = vmatpush1.bf16.msra.mxu0 0
        %732 = vmatprep.subr.bf16.mxu0 0
        %733 = vmatpush1.bf16.msra.mxu0 0
        %734 = vmatprep.subr.bf16.mxu0 0
        %735 = vmatpush1.bf16.msra.mxu0 0
        %736 = vmatprep.subr.bf16.mxu0 0
        %737 = vmatpush1.bf16.msra.mxu0 0
        %738 = vmatprep.subr.bf16.mxu0 0
        %739 = vmatpush1.bf16.msra.mxu0 0
        %740 = vmatprep.subr.bf16.mxu0 0
        %741 = vmatpush1.bf16.msra.mxu0 0
        %742 = vmatprep.subr.bf16.mxu0 0
        %743 = vmatpush1.bf16.msra.mxu0 0
        %744 = vmatprep.mubr.bf16.mxu0 0
        %745 = vmatmul.mubr.bf16.gmra.mrb[0].mxu0 %v592
        %v746 = vpop.f32.mrb[0].mxu0
        %v747 = vadd.f32 0.0, %v746
        %v748 = vpop.f32.mrb[0].mxu0
        %v749 = vpop.f32.mrb[0].mxu0
        %v750 = vadd.f32 0.0, %v749
        %v751 = vpop.f32.mrb[0].mxu0
        %752 = vmatprep.mubr.bf16.mxu0 0
        %753 = vmatmul.mubr.bf16.gmra.mrb[0].mxu0 %v601
        %v754 = vpop.f32.mrb[0].mxu0
        %v755 = vadd.f32 0.0, %v754
        %v756 = vpop.f32.mrb[0].mxu0
        %v757 = vpop.f32.mrb[0].mxu0
        %v758 = vadd.f32 0.0, %v757
        %v759 = vpop.f32.mrb[0].mxu0
        %760 = vmatprep.mubr.bf16.mxu0 0
        %761 = vmatmul.mubr.bf16.gmra.mrb[0].mxu0 %v610
        %v762 = vpop.f32.mrb[0].mxu0
        %v763 = vadd.f32 0.0, %v762
        %v764 = vpop.f32.mrb[0].mxu0
        %v765 = vpop.f32.mrb[0].mxu0
        %v766 = vadd.f32 0.0, %v765
        %v767 = vpop.f32.mrb[0].mxu0
        %768 = vmatprep.mubr.bf16.mxu0 0
        %769 = vmatmul.mubr.bf16.gmra.mrb[0].mxu0 %v619
        %v770 = vpop.f32.mrb[0].mxu0
        %v771 = vadd.f32 0.0, %v770
        %v772 = vpop.f32.mrb[0].mxu0
        %v773 = vpop.f32.mrb[0].mxu0
        %v774 = vadd.f32 0.0, %v773
        %v775 = vpop.f32.mrb[0].mxu0
        %776 = vmatprep.mubr.bf16.mxu0 0
        %777 = vmatmul.mubr.bf16.gmra.mrb[0].mxu0 %v628
        %v778 = vpop.f32.mrb[0].mxu0
        %v779 = vadd.f32 0.0, %v778
        %v780 = vpop.f32.mrb[0].mxu0
        %v781 = vpop.f32.mrb[0].mxu0
        %v782 = vadd.f32 0.0, %v781
        %v783 = vpop.f32.mrb[0].mxu0
        %784 = vmatprep.mubr.bf16.mxu0 0
        %785 = vmatmul.mubr.bf16.gmra.mrb[0].mxu0 %v637
        %v786 = vpop.f32.mrb[0].mxu0
        %v787 = vadd.f32 0.0, %v786
        %v788 = vpop.f32.mrb[0].mxu0
        %v789 = vpop.f32.mrb[0].mxu0
        %v790 = vadd.f32 0.0, %v789
        %v791 = vpop.f32.mrb[0].mxu0
        %792 = vmatprep.mubr.bf16.mxu0 0
        %793 = vmatmul.mubr.bf16.gmra.mrb[0].mxu0 %v646
        %v794 = vpop.f32.mrb[0].mxu0
        %v795 = vadd.f32 0.0, %v794
        %v796 = vpop.f32.mrb[0].mxu0
        %v797 = vpop.f32.mrb[0].mxu0
        %v798 = vadd.f32 0.0, %v797
        %v799 = vpop.f32.mrb[0].mxu0
        %800 = vmatprep.mubr.bf16.mxu0 0
        %801 = vmatmul.mubr.bf16.gmra.mrb[0].mxu0 %v655
        %v802 = vpop.f32.mrb[0].mxu0
        %v803 = vadd.f32 0.0, %v802
        %v804 = vpop.f32.mrb[0].mxu0
        %v805 = vpop.f32.mrb[0].mxu0
        %v806 = vadd.f32 0.0, %v805
        %v807 = vpop.f32.mrb[0].mxu0
        %808 = vdwg.mxu0
        %v809 = vpack.c.b16 %v551, %v550
        %v810 = vpack.c.b16 %v553, %v552
        %v811 = vpack.c.b16 %v555, %v554
        %v812 = vpack.c.b16 %v557, %v556
        %v813 = vpack.c.b16 %v559, %v558
        %v814 = vpack.c.b16 %v561, %v560
        %v815 = vpack.c.b16 %v563, %v562
        %v816 = vpack.c.b16 %v565, %v564
        %v841 = vunpack.c.l.b16 %v498
        %v842 = vunpack.c.l.b16 %v499
        %v843 = vunpack.c.l.b16 %v500
        %v844 = vunpack.c.l.b16 %v501
        %v845 = vunpack.c.l.b16 %v502
        %v846 = vunpack.c.l.b16 %v503
        %v847 = vunpack.c.l.b16 %v504
        %v848 = vunpack.c.l.b16 %v505
        %v849 = vunpack.c.l.b16 %v506
        %v850 = vunpack.c.l.b16 %v507
        %v851 = vunpack.c.l.b16 %v508
        %v852 = vunpack.c.l.b16 %v509
        %v853 = vunpack.c.l.b16 %v510
        %v854 = vunpack.c.l.b16 %v511
        %v855 = vunpack.c.l.b16 %v512
        %v856 = vunpack.c.l.b16 %v513
        %v857 = vpack.c.b16 %v842, %v841
        %v858 = vpack.c.b16 %v844, %v843
        %v859 = vpack.c.b16 %v846, %v845
        %v860 = vpack.c.b16 %v848, %v847
        %v861 = vpack.c.b16 %v850, %v849
        %v862 = vpack.c.b16 %v852, %v851
        %v863 = vpack.c.b16 %v854, %v853
        %v864 = vpack.c.b16 %v856, %v855
        %873 = vmatprep.subr.bf16.mxu0 0
        %874 = vmatpush1.bf16.msra.mxu0 %v857
        %875 = vmatprep.subr.bf16.mxu0 0
        %876 = vmatpush1.bf16.msra.mxu0 %v858
        %877 = vmatprep.subr.bf16.mxu0 0
        %878 = vmatpush1.bf16.msra.mxu0 %v859
        %879 = vmatprep.subr.bf16.mxu0 0
        %880 = vmatpush1.bf16.msra.mxu0 %v860
        %881 = vmatprep.subr.bf16.mxu0 0
        %882 = vmatpush1.bf16.msra.mxu0 %v861
        %883 = vmatprep.subr.bf16.mxu0 0
        %884 = vmatpush1.bf16.msra.mxu0 %v862
        %885 = vmatprep.subr.bf16.mxu0 0
        %886 = vmatpush1.bf16.msra.mxu0 %v863
        %887 = vmatprep.subr.bf16.mxu0 0
        %888 = vmatpush1.bf16.msra.mxu0 %v864
        %889 = vmatprep.subr.bf16.mxu0 0
        %890 = vmatpush1.bf16.msra.mxu0 0
        %891 = vmatprep.subr.bf16.mxu0 0
        %892 = vmatpush1.bf16.msra.mxu0 0
        %893 = vmatprep.subr.bf16.mxu0 0
        %894 = vmatpush1.bf16.msra.mxu0 0
        %895 = vmatprep.subr.bf16.mxu0 0
        %896 = vmatpush1.bf16.msra.mxu0 0
        %897 = vmatprep.subr.bf16.mxu0 0
        %898 = vmatpush1.bf16.msra.mxu0 0
        %899 = vmatprep.subr.bf16.mxu0 0
        %900 = vmatpush1.bf16.msra.mxu0 0
        %901 = vmatprep.subr.bf16.mxu0 0
        %902 = vmatpush1.bf16.msra.mxu0 0
        %903 = vmatprep.subr.bf16.mxu0 0
        %904 = vmatpush1.bf16.msra.mxu0 0
        %905 = vmatprep.mubr.bf16.mxu0 0
        %906 = vmatmul.mubr.bf16.gmra.mrb[0].mxu0 %v809
        %v907 = vpop.f32.mrb[0].mxu0
        %v908 = vadd.f32 %v747, %v907
        %v909 = vpop.f32.mrb[0].mxu0
        %v910 = vpop.f32.mrb[0].mxu0
        %v911 = vadd.f32 %v750, %v910
        %v912 = vpop.f32.mrb[0].mxu0
        %913 = vmatprep.mubr.bf16.mxu0 0
        %914 = vmatmul.mubr.bf16.gmra.mrb[0].mxu0 %v810
        %v915 = vpop.f32.mrb[0].mxu0
        %v916 = vadd.f32 %v755, %v915
        %v917 = vpop.f32.mrb[0].mxu0
        %v918 = vpop.f32.mrb[0].mxu0
        %v919 = vadd.f32 %v758, %v918
        %v920 = vpop.f32.mrb[0].mxu0
        %921 = vmatprep.mubr.bf16.mxu0 0
        %922 = vmatmul.mubr.bf16.gmra.mrb[0].mxu0 %v811
        %v923 = vpop.f32.mrb[0].mxu0
        %v924 = vadd.f32 %v763, %v923
        %v925 = vpop.f32.mrb[0].mxu0
        %v926 = vpop.f32.mrb[0].mxu0
        %v927 = vadd.f32 %v766, %v926
        %v928 = vpop.f32.mrb[0].mxu0
        %929 = vmatprep.mubr.bf16.mxu0 0
        %930 = vmatmul.mubr.bf16.gmra.mrb[0].mxu0 %v812
        %v931 = vpop.f32.mrb[0].mxu0
        %v932 = vadd.f32 %v771, %v931
        %v933 = vpop.f32.mrb[0].mxu0
        %v934 = vpop.f32.mrb[0].mxu0
        %v935 = vadd.f32 %v774, %v934
        %v936 = vpop.f32.mrb[0].mxu0
        %937 = vmatprep.mubr.bf16.mxu0 0
        %938 = vmatmul.mubr.bf16.gmra.mrb[0].mxu0 %v813
        %v939 = vpop.f32.mrb[0].mxu0
        %v940 = vadd.f32 %v779, %v939
        %v941 = vpop.f32.mrb[0].mxu0
        %v942 = vpop.f32.mrb[0].mxu0
        %v943 = vadd.f32 %v782, %v942
        %v944 = vpop.f32.mrb[0].mxu0
        %945 = vmatprep.mubr.bf16.mxu0 0
        %946 = vmatmul.mubr.bf16.gmra.mrb[0].mxu0 %v814
        %v947 = vpop.f32.mrb[0].mxu0
        %v948 = vadd.f32 %v787, %v947
        %v949 = vpop.f32.mrb[0].mxu0
        %v950 = vpop.f32.mrb[0].mxu0
        %v951 = vadd.f32 %v790, %v950
        %v952 = vpop.f32.mrb[0].mxu0
        %953 = vmatprep.mubr.bf16.mxu0 0
        %954 = vmatmul.mubr.bf16.gmra.mrb[0].mxu0 %v815
        %v955 = vpop.f32.mrb[0].mxu0
        %v956 = vadd.f32 %v795, %v955
        %v957 = vpop.f32.mrb[0].mxu0
        %v958 = vpop.f32.mrb[0].mxu0
        %v959 = vadd.f32 %v798, %v958
        %v960 = vpop.f32.mrb[0].mxu0
        %961 = vmatprep.mubr.bf16.mxu0 0
        %962 = vmatmul.mubr.bf16.gmra.mrb[0].mxu0 %v816
        %v963 = vpop.f32.mrb[0].mxu0
        %v964 = vadd.f32 %v803, %v963
        %v965 = vpop.f32.mrb[0].mxu0
        %v966 = vpop.f32.mrb[0].mxu0
        %v967 = vadd.f32 %v806, %v966
        %v968 = vpop.f32.mrb[0].mxu0
        %969 = vdwg.mxu0
        %v970 = vld [vmem:[#allocation2 + $0x40] sm:$0x7]
        %s971 = scalar_lea.vmem [#allocation3], 128
        %v972 = vld [vmem:[%s971] sm:$0xf]
        %v973 = vld [vmem:[%s971 + $0x4] sm:$0xf]
        %v974 = vld [vmem:[%s971 + $0x8] sm:$0xf]
        %v975 = vld [vmem:[%s971 + $0xc] sm:$0xf]
        %v976 = vld [vmem:[%s971 + $0x10] sm:$0xf]
        %v977 = vld [vmem:[%s971 + $0x14] sm:$0xf]
        %v978 = vld [vmem:[%s971 + $0x18] sm:$0xf]
        %v979 = vld [vmem:[%s971 + $0x1c] sm:$0xf]
        %v980 = vld [vmem:[%s971 + $0x20] sm:$0xf]
        %v981 = vld [vmem:[%s971 + $0x24] sm:$0xf]
        %v982 = vld [vmem:[%s971 + $0x28] sm:$0xf]
        %v983 = vld [vmem:[%s971 + $0x2c] sm:$0xf]
        %v984 = vld [vmem:[%s971 + $0x30] sm:$0xf]
        %v985 = vld [vmem:[%s971 + $0x34] sm:$0xf]
        %v986 = vld [vmem:[%s971 + $0x38] sm:$0xf]
        %v987 = vld [vmem:[%s971 + $0x3c] sm:$0xf]
        %v989 = vunpack.c.l.b16 %v970
        %v990 = vpack.c.b16 %v989, %v989
        %vm991 = vcmask 1044480
        %v992 = vrot.slane %v566, 3
        %v993 = vrot.slane %v567, 3
        %v994 = vsel %vm991, %v992, %v993
        %v995 = vrot.slane %v568, 3
        %v996 = vsel %vm991, %v993, %v995
        %v997 = vrot.slane %v569, 3
        %v998 = vsel %vm991, %v995, %v997
        %v999 = vrot.slane %v570, 3
        %v1000 = vsel %vm991, %v997, %v999
        %v1001 = vrot.slane %v571, 3
        %v1002 = vsel %vm991, %v999, %v1001
        %v1003 = vrot.slane %v572, 3
        %v1004 = vsel %vm991, %v1001, %v1003
        %v1005 = vrot.slane %v573, 3
        %v1006 = vsel %vm991, %v1003, %v1005
        %v1007 = vrot.slane %v990, 3
        %v1008 = vsel %vm991, %v1005, %v1007
        %v1033 = vunpack.c.l.b16 %v972
        %v1034 = vunpack.c.l.b16 %v973
        %v1035 = vunpack.c.l.b16 %v974
        %v1036 = vunpack.c.l.b16 %v975
        %v1037 = vunpack.c.l.b16 %v976
        %v1038 = vunpack.c.l.b16 %v977
        %v1039 = vunpack.c.l.b16 %v978
        %v1040 = vunpack.c.l.b16 %v979
        %v1041 = vunpack.c.l.b16 %v980
        %v1042 = vunpack.c.l.b16 %v981
        %v1043 = vunpack.c.l.b16 %v982
        %v1044 = vunpack.c.l.b16 %v983
        %v1045 = vunpack.c.l.b16 %v984
        %v1046 = vunpack.c.l.b16 %v985
        %v1047 = vunpack.c.l.b16 %v986
        %v1048 = vunpack.c.l.b16 %v987
        %v1049 = vpack.c.b16 %v1034, %v1033
        %v1050 = vpack.c.b16 %v1036, %v1035
        %v1051 = vpack.c.b16 %v1038, %v1037
        %v1052 = vpack.c.b16 %v1040, %v1039
        %v1053 = vpack.c.b16 %v1042, %v1041
        %v1054 = vpack.c.b16 %v1044, %v1043
        %v1055 = vpack.c.b16 %v1046, %v1045
        %v1056 = vpack.c.b16 %v1048, %v1047
        %1065 = vmatprep.subr.bf16.mxu0 0
        %1066 = vmatpush1.bf16.msra.mxu0 %v1049
        %1067 = vmatprep.subr.bf16.mxu0 0
        %1068 = vmatpush1.bf16.msra.mxu0 %v1050
        %1069 = vmatprep.subr.bf16.mxu0 0
        %1070 = vmatpush1.bf16.msra.mxu0 %v1051
        %1071 = vmatprep.subr.bf16.mxu0 0
        %1072 = vmatpush1.bf16.msra.mxu0 %v1052
        %1073 = vmatprep.subr.bf16.mxu0 0
        %1074 = vmatpush1.bf16.msra.mxu0 %v1053
        %1075 = vmatprep.subr.bf16.mxu0 0
        %1076 = vmatpush1.bf16.msra.mxu0 %v1054
        %1077 = vmatprep.subr.bf16.mxu0 0
        %1078 = vmatpush1.bf16.msra.mxu0 %v1055
        %1079 = vmatprep.subr.bf16.mxu0 0
        %1080 = vmatpush1.bf16.msra.mxu0 %v1056
        %1081 = vmatprep.subr.bf16.mxu0 0
        %1082 = vmatpush1.bf16.msra.mxu0 0
        %1083 = vmatprep.subr.bf16.mxu0 0
        %1084 = vmatpush1.bf16.msra.mxu0 0
        %1085 = vmatprep.subr.bf16.mxu0 0
        %1086 = vmatpush1.bf16.msra.mxu0 0
        %1087 = vmatprep.subr.bf16.mxu0 0
        %1088 = vmatpush1.bf16.msra.mxu0 0
        %1089 = vmatprep.subr.bf16.mxu0 0
        %1090 = vmatpush1.bf16.msra.mxu0 0
        %1091 = vmatprep.subr.bf16.mxu0 0
        %1092 = vmatpush1.bf16.msra.mxu0 0
        %1093 = vmatprep.subr.bf16.mxu0 0
        %1094 = vmatpush1.bf16.msra.mxu0 0
        %1095 = vmatprep.subr.bf16.mxu0 0
        %1096 = vmatpush1.bf16.msra.mxu0 0
        %1097 = vmatprep.mubr.bf16.mxu0 0
        %1098 = vmatmul.mubr.bf16.gmra.mrb[0].mxu0 %v994
        %v1099 = vpop.f32.mrb[0].mxu0
        %v1100 = vadd.f32 0.0, %v1099
        %v1101 = vpop.f32.mrb[0].mxu0
        %v1102 = vpop.f32.mrb[0].mxu0
        %v1103 = vadd.f32 0.0, %v1102
        %v1104 = vpop.f32.mrb[0].mxu0
        %1105 = vmatprep.mubr.bf16.mxu0 0
        %1106 = vmatmul.mubr.bf16.gmra.mrb[0].mxu0 %v996
        %v1107 = vpop.f32.mrb[0].mxu0
        %v1108 = vadd.f32 0.0, %v1107
        %v1109 = vpop.f32.mrb[0].mxu0
        %v1110 = vpop.f32.mrb[0].mxu0
        %v1111 = vadd.f32 0.0, %v1110
        %v1112 = vpop.f32.mrb[0].mxu0
        %1113 = vmatprep.mubr.bf16.mxu0 0
        %1114 = vmatmul.mubr.bf16.gmra.mrb[0].mxu0 %v998
        %v1115 = vpop.f32.mrb[0].mxu0
        %v1116 = vadd.f32 0.0, %v1115
        %v1117 = vpop.f32.mrb[0].mxu0
        %v1118 = vpop.f32.mrb[0].mxu0
        %v1119 = vadd.f32 0.0, %v1118
        %v1120 = vpop.f32.mrb[0].mxu0
        %1121 = vmatprep.mubr.bf16.mxu0 0
        %1122 = vmatmul.mubr.bf16.gmra.mrb[0].mxu0 %v1000
        %v1123 = vpop.f32.mrb[0].mxu0
        %v1124 = vadd.f32 0.0, %v1123
        %v1125 = vpop.f32.mrb[0].mxu0
        %v1126 = vpop.f32.mrb[0].mxu0
        %v1127 = vadd.f32 0.0, %v1126
        %v1128 = vpop.f32.mrb[0].mxu0
        %1129 = vmatprep.mubr.bf16.mxu0 0
        %1130 = vmatmul.mubr.bf16.gmra.mrb[0].mxu0 %v1002
        %v1131 = vpop.f32.mrb[0].mxu0
        %v1132 = vadd.f32 0.0, %v1131
        %v1133 = vpop.f32.mrb[0].mxu0
        %v1134 = vpop.f32.mrb[0].mxu0
        %v1135 = vadd.f32 0.0, %v1134
        %v1136 = vpop.f32.mrb[0].mxu0
        %1137 = vmatprep.mubr.bf16.mxu0 0
        %1138 = vmatmul.mubr.bf16.gmra.mrb[0].mxu0 %v1004
        %v1139 = vpop.f32.mrb[0].mxu0
        %v1140 = vadd.f32 0.0, %v1139
        %v1141 = vpop.f32.mrb[0].mxu0
        %v1142 = vpop.f32.mrb[0].mxu0
        %v1143 = vadd.f32 0.0, %v1142
        %v1144 = vpop.f32.mrb[0].mxu0
        %1145 = vmatprep.mubr.bf16.mxu0 0
        %1146 = vmatmul.mubr.bf16.gmra.mrb[0].mxu0 %v1006
        %v1147 = vpop.f32.mrb[0].mxu0
        %v1148 = vadd.f32 0.0, %v1147
        %v1149 = vpop.f32.mrb[0].mxu0
        %v1150 = vpop.f32.mrb[0].mxu0
        %v1151 = vadd.f32 0.0, %v1150
        %v1152 = vpop.f32.mrb[0].mxu0
        %1153 = vmatprep.mubr.bf16.mxu0 0
        %1154 = vmatmul.mubr.bf16.gmra.mrb[0].mxu0 %v1008
        %v1155 = vpop.f32.mrb[0].mxu0
        %v1156 = vadd.f32 0.0, %v1155
        %v1157 = vpop.f32.mrb[0].mxu0
        %v1158 = vpop.f32.mrb[0].mxu0
        %v1159 = vadd.f32 0.0, %v1158
        %v1160 = vpop.f32.mrb[0].mxu0
        %1161 = vdwg.mxu0
        %v1162 = vadd.f32 %v908, %v1100
        %v1163 = vadd.f32 %v911, %v1103
        %v1164 = vadd.f32 %v916, %v1108
        %v1165 = vadd.f32 %v919, %v1111
        %v1166 = vadd.f32 %v924, %v1116
        %v1167 = vadd.f32 %v927, %v1119
        %v1168 = vadd.f32 %v932, %v1124
        %v1169 = vadd.f32 %v935, %v1127
        %v1170 = vadd.f32 %v940, %v1132
        %v1171 = vadd.f32 %v943, %v1135
        %v1172 = vadd.f32 %v948, %v1140
        %v1173 = vadd.f32 %v951, %v1143
        %v1174 = vadd.f32 %v956, %v1148
        %v1175 = vadd.f32 %v959, %v1151
        %v1176 = vadd.f32 %v964, %v1156
        %v1177 = vadd.f32 %v967, %v1159
        %v1178 = vld [vmem:[#allocation2] sm:$0xc]
        %s1179 = scalar_lea.vmem [#allocation3], 192
        %v1180 = vld [vmem:[%s1179] sm:$0xf]
        %v1181 = vld [vmem:[%s1179 + $0x4] sm:$0xf]
        %v1182 = vld [vmem:[%s1179 + $0x8] sm:$0xf]
        %v1183 = vld [vmem:[%s1179 + $0xc] sm:$0xf]
        %v1184 = vld [vmem:[%s1179 + $0x10] sm:$0xf]
        %v1185 = vld [vmem:[%s1179 + $0x14] sm:$0xf]
        %v1186 = vld [vmem:[%s1179 + $0x18] sm:$0xf]
        %v1187 = vld [vmem:[%s1179 + $0x1c] sm:$0xf]
        %v1188 = vld [vmem:[%s1179 + $0x20] sm:$0xf]
        %v1189 = vld [vmem:[%s1179 + $0x24] sm:$0xf]
        %v1190 = vld [vmem:[%s1179 + $0x28] sm:$0xf]
        %v1191 = vld [vmem:[%s1179 + $0x2c] sm:$0xf]
        %v1192 = vld [vmem:[%s1179 + $0x30] sm:$0xf]
        %v1193 = vld [vmem:[%s1179 + $0x34] sm:$0xf]
        %v1194 = vld [vmem:[%s1179 + $0x38] sm:$0xf]
        %v1195 = vld [vmem:[%s1179 + $0x3c] sm:$0xf]
        %v1197 = vunpack.c.l.b16 %v1178
        %v1198 = vpack.c.b16 %v550, %v1197
        %vm1199 = vsmask.f32 5376
        %v1201 = vshrl.u32 %v1198, 16
        %v1203 = vrot.slane %v1201, 2
        %v1204 = vshll.u32 %v1198, 16
        %v1206 = vrot.slane %v1204, 3
        %v1207 = vor.u32 %v1203, %v1206
        %v1208 = vrot.slane %v585, 2
        %v1209 = vrot.slane %v588, 3
        %v1210 = vor.u32 %v1208, %v1209
        %v1211 = vsel %vm1199, %v1207, %v1210
        %v1212 = vrot.slane %v594, 2
        %v1213 = vrot.slane %v597, 3
        %v1214 = vor.u32 %v1212, %v1213
        %v1215 = vsel %vm1199, %v1210, %v1214
        %v1216 = vrot.slane %v603, 2
        %v1217 = vrot.slane %v606, 3
        %v1218 = vor.u32 %v1216, %v1217
        %v1219 = vsel %vm1199, %v1214, %v1218
        %v1220 = vrot.slane %v612, 2
        %v1221 = vrot.slane %v615, 3
        %v1222 = vor.u32 %v1220, %v1221
        %v1223 = vsel %vm1199, %v1218, %v1222
        %v1224 = vrot.slane %v621, 2
        %v1225 = vrot.slane %v624, 3
        %v1226 = vor.u32 %v1224, %v1225
        %v1227 = vsel %vm1199, %v1222, %v1226
        %v1228 = vrot.slane %v630, 2
        %v1229 = vrot.slane %v633, 3
        %v1230 = vor.u32 %v1228, %v1229
        %v1231 = vsel %vm1199, %v1226, %v1230
        %v1232 = vrot.slane %v639, 2
        %v1233 = vrot.slane %v642, 3
        %v1234 = vor.u32 %v1232, %v1233
        %v1235 = vsel %vm1199, %v1230, %v1234
        %v1237 = vshrl.u32 %v990, 16
        %v1239 = vrot.slane %v1237, 2
        %v1240 = vshll.u32 %v990, 16
        %v1242 = vrot.slane %v1240, 3
        %v1243 = vor.u32 %v1239, %v1242
        %v1244 = vsel %vm1199, %v1234, %v1243
        %v1269 = vunpack.c.l.b16 %v1180
        %v1270 = vunpack.c.l.b16 %v1181
        %v1271 = vunpack.c.l.b16 %v1182
        %v1272 = vunpack.c.l.b16 %v1183
        %v1273 = vunpack.c.l.b16 %v1184
        %v1274 = vunpack.c.l.b16 %v1185
        %v1275 = vunpack.c.l.b16 %v1186
        %v1276 = vunpack.c.l.b16 %v1187
        %v1277 = vunpack.c.l.b16 %v1188
        %v1278 = vunpack.c.l.b16 %v1189
        %v1279 = vunpack.c.l.b16 %v1190
        %v1280 = vunpack.c.l.b16 %v1191
        %v1281 = vunpack.c.l.b16 %v1192
        %v1282 = vunpack.c.l.b16 %v1193
        %v1283 = vunpack.c.l.b16 %v1194
        %v1284 = vunpack.c.l.b16 %v1195
        %v1285 = vpack.c.b16 %v1270, %v1269
        %v1286 = vpack.c.b16 %v1272, %v1271
        %v1287 = vpack.c.b16 %v1274, %v1273
        %v1288 = vpack.c.b16 %v1276, %v1275
        %v1289 = vpack.c.b16 %v1278, %v1277
        %v1290 = vpack.c.b16 %v1280, %v1279
        %v1291 = vpack.c.b16 %v1282, %v1281
        %v1292 = vpack.c.b16 %v1284, %v1283
        %1301 = vmatprep.subr.bf16.mxu0 0
        %1302 = vmatpush1.bf16.msra.mxu0 %v1285
        %1303 = vmatprep.subr.bf16.mxu0 0
        %1304 = vmatpush1.bf16.msra.mxu0 %v1286
        %1305 = vmatprep.subr.bf16.mxu0 0
        %1306 = vmatpush1.bf16.msra.mxu0 %v1287
        %1307 = vmatprep.subr.bf16.mxu0 0
        %1308 = vmatpush1.bf16.msra.mxu0 %v1288
        %1309 = vmatprep.subr.bf16.mxu0 0
        %1310 = vmatpush1.bf16.msra.mxu0 %v1289
        %1311 = vmatprep.subr.bf16.mxu0 0
        %1312 = vmatpush1.bf16.msra.mxu0 %v1290
        %1313 = vmatprep.subr.bf16.mxu0 0
        %1314 = vmatpush1.bf16.msra.mxu0 %v1291
        %1315 = vmatprep.subr.bf16.mxu0 0
        %1316 = vmatpush1.bf16.msra.mxu0 %v1292
        %1317 = vmatprep.subr.bf16.mxu0 0
        %1318 = vmatpush1.bf16.msra.mxu0 0
        %1319 = vmatprep.subr.bf16.mxu0 0
        %1320 = vmatpush1.bf16.msra.mxu0 0
        %1321 = vmatprep.subr.bf16.mxu0 0
        %1322 = vmatpush1.bf16.msra.mxu0 0
        %1323 = vmatprep.subr.bf16.mxu0 0
        %1324 = vmatpush1.bf16.msra.mxu0 0
        %1325 = vmatprep.subr.bf16.mxu0 0
        %1326 = vmatpush1.bf16.msra.mxu0 0
        %1327 = vmatprep.subr.bf16.mxu0 0
        %1328 = vmatpush1.bf16.msra.mxu0 0
        %1329 = vmatprep.subr.bf16.mxu0 0
        %1330 = vmatpush1.bf16.msra.mxu0 0
        %1331 = vmatprep.subr.bf16.mxu0 0
        %1332 = vmatpush1.bf16.msra.mxu0 0
        %1333 = vmatprep.mubr.bf16.mxu0 0
        %1334 = vmatmul.mubr.bf16.gmra.mrb[0].mxu0 %v1211
        %v1335 = vpop.f32.mrb[0].mxu0
        %v1336 = vadd.f32 0.0, %v1335
        %v1337 = vpop.f32.mrb[0].mxu0
        %v1338 = vpop.f32.mrb[0].mxu0
        %v1339 = vadd.f32 0.0, %v1338
        %v1340 = vpop.f32.mrb[0].mxu0
        %1341 = vmatprep.mubr.bf16.mxu0 0
        %1342 = vmatmul.mubr.bf16.gmra.mrb[0].mxu0 %v1215
        %v1343 = vpop.f32.mrb[0].mxu0
        %v1344 = vadd.f32 0.0, %v1343
        %v1345 = vpop.f32.mrb[0].mxu0
        %v1346 = vpop.f32.mrb[0].mxu0
        %v1347 = vadd.f32 0.0, %v1346
        %v1348 = vpop.f32.mrb[0].mxu0
        %1349 = vmatprep.mubr.bf16.mxu0 0
        %1350 = vmatmul.mubr.bf16.gmra.mrb[0].mxu0 %v1219
        %v1351 = vpop.f32.mrb[0].mxu0
        %v1352 = vadd.f32 0.0, %v1351
        %v1353 = vpop.f32.mrb[0].mxu0
        %v1354 = vpop.f32.mrb[0].mxu0
        %v1355 = vadd.f32 0.0, %v1354
        %v1356 = vpop.f32.mrb[0].mxu0
        %1357 = vmatprep.mubr.bf16.mxu0 0
        %1358 = vmatmul.mubr.bf16.gmra.mrb[0].mxu0 %v1223
        %v1359 = vpop.f32.mrb[0].mxu0
        %v1360 = vadd.f32 0.0, %v1359
        %v1361 = vpop.f32.mrb[0].mxu0
        %v1362 = vpop.f32.mrb[0].mxu0
        %v1363 = vadd.f32 0.0, %v1362
        %v1364 = vpop.f32.mrb[0].mxu0
        %1365 = vmatprep.mubr.bf16.mxu0 0
        %1366 = vmatmul.mubr.bf16.gmra.mrb[0].mxu0 %v1227
        %v1367 = vpop.f32.mrb[0].mxu0
        %v1368 = vadd.f32 0.0, %v1367
        %v1369 = vpop.f32.mrb[0].mxu0
        %v1370 = vpop.f32.mrb[0].mxu0
        %v1371 = vadd.f32 0.0, %v1370
        %v1372 = vpop.f32.mrb[0].mxu0
        %1373 = vmatprep.mubr.bf16.mxu0 0
        %1374 = vmatmul.mubr.bf16.gmra.mrb[0].mxu0 %v1231
        %v1375 = vpop.f32.mrb[0].mxu0
        %v1376 = vadd.f32 0.0, %v1375
        %v1377 = vpop.f32.mrb[0].mxu0
        %v1378 = vpop.f32.mrb[0].mxu0
        %v1379 = vadd.f32 0.0, %v1378
        %v1380 = vpop.f32.mrb[0].mxu0
        %1381 = vmatprep.mubr.bf16.mxu0 0
        %1382 = vmatmul.mubr.bf16.gmra.mrb[0].mxu0 %v1235
        %v1383 = vpop.f32.mrb[0].mxu0
        %v1384 = vadd.f32 0.0, %v1383
        %v1385 = vpop.f32.mrb[0].mxu0
        %v1386 = vpop.f32.mrb[0].mxu0
        %v1387 = vadd.f32 0.0, %v1386
        %v1388 = vpop.f32.mrb[0].mxu0
        %1389 = vmatprep.mubr.bf16.mxu0 0
        %1390 = vmatmul.mubr.bf16.gmra.mrb[0].mxu0 %v1244
        %v1391 = vpop.f32.mrb[0].mxu0
        %v1392 = vadd.f32 0.0, %v1391
        %v1393 = vpop.f32.mrb[0].mxu0
        %v1394 = vpop.f32.mrb[0].mxu0
        %v1395 = vadd.f32 0.0, %v1394
        %v1396 = vpop.f32.mrb[0].mxu0
        %1397 = vdwg.mxu0
        %v1398 = vadd.f32 %v1162, %v1336
        %v1399 = vadd.f32 %v1163, %v1339
        %v1400 = vadd.f32 %v1164, %v1344
        %v1401 = vadd.f32 %v1165, %v1347
        %v1402 = vadd.f32 %v1166, %v1352
        %v1403 = vadd.f32 %v1167, %v1355
        %v1404 = vadd.f32 %v1168, %v1360
        %v1405 = vadd.f32 %v1169, %v1363
        %v1406 = vadd.f32 %v1170, %v1368
        %v1407 = vadd.f32 %v1171, %v1371
        %v1408 = vadd.f32 %v1172, %v1376
        %v1409 = vadd.f32 %v1173, %v1379
        %v1410 = vadd.f32 %v1174, %v1384
        %v1411 = vadd.f32 %v1175, %v1387
        %v1412 = vadd.f32 %v1176, %v1392
        %v1413 = vadd.f32 %v1177, %v1395
        %v1414 = vld [vmem:[#allocation2 + $0x40] sm:$0x3]
        %s1415 = scalar_lea.vmem [#allocation3], 256
        %v1416 = vld [vmem:[%s1415] sm:$0xf]
        %v1417 = vld [vmem:[%s1415 + $0x4] sm:$0xf]
        %v1418 = vld [vmem:[%s1415 + $0x8] sm:$0xf]
        %v1419 = vld [vmem:[%s1415 + $0xc] sm:$0xf]
        %v1420 = vld [vmem:[%s1415 + $0x10] sm:$0xf]
        %v1421 = vld [vmem:[%s1415 + $0x14] sm:$0xf]
        %v1422 = vld [vmem:[%s1415 + $0x18] sm:$0xf]
        %v1423 = vld [vmem:[%s1415 + $0x1c] sm:$0xf]
        %v1424 = vld [vmem:[%s1415 + $0x20] sm:$0xf]
        %v1425 = vld [vmem:[%s1415 + $0x24] sm:$0xf]
        %v1426 = vld [vmem:[%s1415 + $0x28] sm:$0xf]
        %v1427 = vld [vmem:[%s1415 + $0x2c] sm:$0xf]
        %v1428 = vld [vmem:[%s1415 + $0x30] sm:$0xf]
        %v1429 = vld [vmem:[%s1415 + $0x34] sm:$0xf]
        %v1430 = vld [vmem:[%s1415 + $0x38] sm:$0xf]
        %v1431 = vld [vmem:[%s1415 + $0x3c] sm:$0xf]
        %v1433 = vunpack.c.l.b16 %v1414
        %v1434 = vpack.c.b16 %v1433, %v1433
        %vm1435 = vcmask 1045504
        %v1436 = vrot.slane %v1198, 2
        %v1437 = vrot.slane %v567, 2
        %v1438 = vsel %vm1435, %v1436, %v1437
        %v1439 = vrot.slane %v568, 2
        %v1440 = vsel %vm1435, %v1437, %v1439
        %v1441 = vrot.slane %v569, 2
        %v1442 = vsel %vm1435, %v1439, %v1441
        %v1443 = vrot.slane %v570, 2
        %v1444 = vsel %vm1435, %v1441, %v1443
        %v1445 = vrot.slane %v571, 2
        %v1446 = vsel %vm1435, %v1443, %v1445
        %v1447 = vrot.slane %v572, 2
        %v1448 = vsel %vm1435, %v1445, %v1447
        %v1449 = vrot.slane %v573, 2
        %v1450 = vsel %vm1435, %v1447, %v1449
        %v1451 = vrot.slane %v1434, 2
        %v1452 = vsel %vm1435, %v1449, %v1451
        %v1477 = vunpack.c.l.b16 %v1416
        %v1478 = vunpack.c.l.b16 %v1417
        %v1479 = vunpack.c.l.b16 %v1418
        %v1480 = vunpack.c.l.b16 %v1419
        %v1481 = vunpack.c.l.b16 %v1420
        %v1482 = vunpack.c.l.b16 %v1421
        %v1483 = vunpack.c.l.b16 %v1422
        %v1484 = vunpack.c.l.b16 %v1423
        %v1485 = vunpack.c.l.b16 %v1424
        %v1486 = vunpack.c.l.b16 %v1425
        %v1487 = vunpack.c.l.b16 %v1426
        %v1488 = vunpack.c.l.b16 %v1427
        %v1489 = vunpack.c.l.b16 %v1428
        %v1490 = vunpack.c.l.b16 %v1429
        %v1491 = vunpack.c.l.b16 %v1430
        %v1492 = vunpack.c.l.b16 %v1431
        %v1493 = vpack.c.b16 %v1478, %v1477
        %v1494 = vpack.c.b16 %v1480, %v1479
        %v1495 = vpack.c.b16 %v1482, %v1481
        %v1496 = vpack.c.b16 %v1484, %v1483
        %v1497 = vpack.c.b16 %v1486, %v1485
        %v1498 = vpack.c.b16 %v1488, %v1487
        %v1499 = vpack.c.b16 %v1490, %v1489
        %v1500 = vpack.c.b16 %v1492, %v1491
        %1509 = vmatprep.subr.bf16.mxu0 0
        %1510 = vmatpush1.bf16.msra.mxu0 %v1493
        %1511 = vmatprep.subr.bf16.mxu0 0
        %1512 = vmatpush1.bf16.msra.mxu0 %v1494
        %1513 = vmatprep.subr.bf16.mxu0 0
        %1514 = vmatpush1.bf16.msra.mxu0 %v1495
        %1515 = vmatprep.subr.bf16.mxu0 0
        %1516 = vmatpush1.bf16.msra.mxu0 %v1496
        %1517 = vmatprep.subr.bf16.mxu0 0
        %1518 = vmatpush1.bf16.msra.mxu0 %v1497
        %1519 = vmatprep.subr.bf16.mxu0 0
        %1520 = vmatpush1.bf16.msra.mxu0 %v1498
        %1521 = vmatprep.subr.bf16.mxu0 0
        %1522 = vmatpush1.bf16.msra.mxu0 %v1499
        %1523 = vmatprep.subr.bf16.mxu0 0
        %1524 = vmatpush1.bf16.msra.mxu0 %v1500
        %1525 = vmatprep.subr.bf16.mxu0 0
        %1526 = vmatpush1.bf16.msra.mxu0 0
        %1527 = vmatprep.subr.bf16.mxu0 0
        %1528 = vmatpush1.bf16.msra.mxu0 0
        %1529 = vmatprep.subr.bf16.mxu0 0
        %1530 = vmatpush1.bf16.msra.mxu0 0
        %1531 = vmatprep.subr.bf16.mxu0 0
        %1532 = vmatpush1.bf16.msra.mxu0 0
        %1533 = vmatprep.subr.bf16.mxu0 0
        %1534 = vmatpush1.bf16.msra.mxu0 0
        %1535 = vmatprep.subr.bf16.mxu0 0
        %1536 = vmatpush1.bf16.msra.mxu0 0
        %1537 = vmatprep.subr.bf16.mxu0 0
        %1538 = vmatpush1.bf16.msra.mxu0 0
        %1539 = vmatprep.subr.bf16.mxu0 0
        %1540 = vmatpush1.bf16.msra.mxu0 0
        %1541 = vmatprep.mubr.bf16.mxu0 0
        %1542 = vmatmul.mubr.bf16.gmra.mrb[0].mxu0 %v1438
        %v1543 = vpop.f32.mrb[0].mxu0
        %v1544 = vadd.f32 0.0, %v1543
        %v1545 = vpop.f32.mrb[0].mxu0
        %v1546 = vpop.f32.mrb[0].mxu0
        %v1547 = vadd.f32 0.0, %v1546
        %v1548 = vpop.f32.mrb[0].mxu0
        %1549 = vmatprep.mubr.bf16.mxu0 0
        %1550 = vmatmul.mubr.bf16.gmra.mrb[0].mxu0 %v1440
        %v1551 = vpop.f32.mrb[0].mxu0
        %v1552 = vadd.f32 0.0, %v1551
        %v1553 = vpop.f32.mrb[0].mxu0
        %v1554 = vpop.f32.mrb[0].mxu0
        %v1555 = vadd.f32 0.0, %v1554
        %v1556 = vpop.f32.mrb[0].mxu0
        %1557 = vmatprep.mubr.bf16.mxu0 0
        %1558 = vmatmul.mubr.bf16.gmra.mrb[0].mxu0 %v1442
        %v1559 = vpop.f32.mrb[0].mxu0
        %v1560 = vadd.f32 0.0, %v1559
        %v1561 = vpop.f32.mrb[0].mxu0
        %v1562 = vpop.f32.mrb[0].mxu0
        %v1563 = vadd.f32 0.0, %v1562
        %v1564 = vpop.f32.mrb[0].mxu0
        %1565 = vmatprep.mubr.bf16.mxu0 0
        %1566 = vmatmul.mubr.bf16.gmra.mrb[0].mxu0 %v1444
        %v1567 = vpop.f32.mrb[0].mxu0
        %v1568 = vadd.f32 0.0, %v1567
        %v1569 = vpop.f32.mrb[0].mxu0
        %v1570 = vpop.f32.mrb[0].mxu0
        %v1571 = vadd.f32 0.0, %v1570
        %v1572 = vpop.f32.mrb[0].mxu0
        %1573 = vmatprep.mubr.bf16.mxu0 0
        %1574 = vmatmul.mubr.bf16.gmra.mrb[0].mxu0 %v1446
        %v1575 = vpop.f32.mrb[0].mxu0
        %v1576 = vadd.f32 0.0, %v1575
        %v1577 = vpop.f32.mrb[0].mxu0
        %v1578 = vpop.f32.mrb[0].mxu0
        %v1579 = vadd.f32 0.0, %v1578
        %v1580 = vpop.f32.mrb[0].mxu0
        %1581 = vmatprep.mubr.bf16.mxu0 0
        %1582 = vmatmul.mubr.bf16.gmra.mrb[0].mxu0 %v1448
        %v1583 = vpop.f32.mrb[0].mxu0
        %v1584 = vadd.f32 0.0, %v1583
        %v1585 = vpop.f32.mrb[0].mxu0
        %v1586 = vpop.f32.mrb[0].mxu0
        %v1587 = vadd.f32 0.0, %v1586
        %v1588 = vpop.f32.mrb[0].mxu0
        %1589 = vmatprep.mubr.bf16.mxu0 0
        %1590 = vmatmul.mubr.bf16.gmra.mrb[0].mxu0 %v1450
        %v1591 = vpop.f32.mrb[0].mxu0
        %v1592 = vadd.f32 0.0, %v1591
        %v1593 = vpop.f32.mrb[0].mxu0
        %v1594 = vpop.f32.mrb[0].mxu0
        %v1595 = vadd.f32 0.0, %v1594
        %v1596 = vpop.f32.mrb[0].mxu0
        %1597 = vmatprep.mubr.bf16.mxu0 0
        %1598 = vmatmul.mubr.bf16.gmra.mrb[0].mxu0 %v1452
        %v1599 = vpop.f32.mrb[0].mxu0
        %v1600 = vadd.f32 0.0, %v1599
        %v1601 = vpop.f32.mrb[0].mxu0
        %v1602 = vpop.f32.mrb[0].mxu0
        %v1603 = vadd.f32 0.0, %v1602
        %v1604 = vpop.f32.mrb[0].mxu0
        %1605 = vdwg.mxu0
        %v1606 = vadd.f32 %v1398, %v1544
        %v1607 = vadd.f32 %v1399, %v1547
        %v1608 = vadd.f32 %v1400, %v1552
        %v1609 = vadd.f32 %v1401, %v1555
        %v1610 = vadd.f32 %v1402, %v1560
        %v1611 = vadd.f32 %v1403, %v1563
        %v1612 = vadd.f32 %v1404, %v1568
        %v1613 = vadd.f32 %v1405, %v1571
        %v1614 = vadd.f32 %v1406, %v1576
        %v1615 = vadd.f32 %v1407, %v1579
        %v1616 = vadd.f32 %v1408, %v1584
        %v1617 = vadd.f32 %v1409, %v1587
        %v1618 = vadd.f32 %v1410, %v1592
        %v1619 = vadd.f32 %v1411, %v1595
        %v1620 = vadd.f32 %v1412, %v1600
        %v1621 = vadd.f32 %v1413, %v1603
        %v1622 = vld [vmem:[%s240] sm:$0xff]
        %v1623 = vld [vmem:[%s240 + $0x8] sm:$0xff]
        %v1624 = vld [vmem:[%s240 + $0x10] sm:$0xff]
        %v1625 = vld [vmem:[%s240 + $0x18] sm:$0xff]
        %v1626 = vld [vmem:[%s240 + $0x20] sm:$0xff]
        %v1627 = vld [vmem:[%s240 + $0x28] sm:$0xff]
        %v1628 = vld [vmem:[%s240 + $0x30] sm:$0xff]
        %v1629 = vld [vmem:[%s240 + $0x38] sm:$0xff]
        %v1630 = vld [vmem:[%s240 + $0x40] sm:$0xff]
        %v1631 = vld [vmem:[%s240 + $0x48] sm:$0xff]
        %v1632 = vld [vmem:[%s240 + $0x50] sm:$0xff]
        %v1633 = vld [vmem:[%s240 + $0x58] sm:$0xff]
        %v1634 = vld [vmem:[%s240 + $0x60] sm:$0xff]
        %v1635 = vld [vmem:[%s240 + $0x68] sm:$0xff]
        %v1636 = vld [vmem:[%s240 + $0x70] sm:$0xff]
        %v1637 = vld [vmem:[%s240 + $0x78] sm:$0xff]
        %v1638 = vmul.f32 %v1622, 0.4
        %v1639 = vmul.f32 %v1623, 0.4
        %v1640 = vmul.f32 %v1624, 0.4
        %v1641 = vmul.f32 %v1625, 0.4
        %v1642 = vmul.f32 %v1626, 0.4
        %v1643 = vmul.f32 %v1627, 0.4
        %v1644 = vmul.f32 %v1628, 0.4
        %v1645 = vmul.f32 %v1629, 0.4
        %v1646 = vmul.f32 %v1630, 0.4
        %v1647 = vmul.f32 %v1631, 0.4
        %v1648 = vmul.f32 %v1632, 0.4
        %v1649 = vmul.f32 %v1633, 0.4
        %v1650 = vmul.f32 %v1634, 0.4
        %v1651 = vmul.f32 %v1635, 0.4
        %v1652 = vmul.f32 %v1636, 0.4
        %v1653 = vmul.f32 %v1637, 0.4
        %v1654 = vmul.f32 %v1606, 0.33
        %v1655 = vmul.f32 %v1607, 0.33
        %v1656 = vmul.f32 %v1608, 0.33
        %v1657 = vmul.f32 %v1609, 0.33
        %v1658 = vmul.f32 %v1610, 0.33
        %v1659 = vmul.f32 %v1611, 0.33
        %v1660 = vmul.f32 %v1612, 0.33
        %v1661 = vmul.f32 %v1613, 0.33
        %v1662 = vmul.f32 %v1614, 0.33
        %v1663 = vmul.f32 %v1615, 0.33
        %v1664 = vmul.f32 %v1616, 0.33
        %v1665 = vmul.f32 %v1617, 0.33
        %v1666 = vmul.f32 %v1618, 0.33
        %v1667 = vmul.f32 %v1619, 0.33
        %v1668 = vmul.f32 %v1620, 0.33
        %v1669 = vmul.f32 %v1621, 0.33
        %v1670 = vadd.f32 %v1638, %v1654
        %v1671 = vadd.f32 %v1639, %v1655
        %v1672 = vadd.f32 %v1640, %v1656
        %v1673 = vadd.f32 %v1641, %v1657
        %v1674 = vadd.f32 %v1642, %v1658
        %v1675 = vadd.f32 %v1643, %v1659
        %v1676 = vadd.f32 %v1644, %v1660
        %v1677 = vadd.f32 %v1645, %v1661
        %v1678 = vadd.f32 %v1646, %v1662
        %v1679 = vadd.f32 %v1647, %v1663
        %v1680 = vadd.f32 %v1648, %v1664
        %v1681 = vadd.f32 %v1649, %v1665
        %v1682 = vadd.f32 %v1650, %v1666
        %v1683 = vadd.f32 %v1651, %v1667
        %v1684 = vadd.f32 %v1652, %v1668
        %v1685 = vadd.f32 %v1653, %v1669
        %1686 = vst [vmem:[%s276] sm:$0xff] %v1670
        %1687 = vst [vmem:[%s276 + $0x8] sm:$0xff] %v1671
        %1688 = vst [vmem:[%s276 + $0x10] sm:$0xff] %v1672
        %1689 = vst [vmem:[%s276 + $0x18] sm:$0xff] %v1673
        %1690 = vst [vmem:[%s276 + $0x20] sm:$0xff] %v1674
        %1691 = vst [vmem:[%s276 + $0x28] sm:$0xff] %v1675
        %1692 = vst [vmem:[%s276 + $0x30] sm:$0xff] %v1676
        %1693 = vst [vmem:[%s276 + $0x38] sm:$0xff] %v1677
        %1694 = vst [vmem:[%s276 + $0x40] sm:$0xff] %v1678
        %1695 = vst [vmem:[%s276 + $0x48] sm:$0xff] %v1679
        %1696 = vst [vmem:[%s276 + $0x50] sm:$0xff] %v1680
        %1697 = vst [vmem:[%s276 + $0x58] sm:$0xff] %v1681
        %1698 = vst [vmem:[%s276 + $0x60] sm:$0xff] %v1682
        %1699 = vst [vmem:[%s276 + $0x68] sm:$0xff] %v1683
        %1700 = vst [vmem:[%s276 + $0x70] sm:$0xff] %v1684
        %1701 = vst [vmem:[%s276 + $0x78] sm:$0xff] %v1685
        %s1702 = scalar_lea.vmem [#allocation2], 68
        %v1703 = vld [vmem:[%s1702 + $0x4] sm:$0xf]
        %v1704 = vld [vmem:[%s1702 + $0x8] sm:$0xf]
        %v1705 = vld [vmem:[%s1702 + $0xc] sm:$0xf]
        %v1706 = vld [vmem:[%s1702 + $0x10] sm:$0xf]
        %v1707 = vld [vmem:[%s1702 + $0x14] sm:$0xf]
        %v1708 = vld [vmem:[%s1702 + $0x18] sm:$0xf]
        %v1709 = vld [vmem:[%s1702 + $0x1c] sm:$0xf]
        %v1710 = vld [vmem:[%s1702 + $0x20] sm:$0xf]
        %v1711 = vld [vmem:[%s1702 + $0x24] sm:$0xf]
        %v1712 = vld [vmem:[%s1702 + $0x28] sm:$0xf]
        %v1713 = vld [vmem:[%s1702 + $0x2c] sm:$0xf]
        %v1714 = vld [vmem:[%s1702 + $0x30] sm:$0xf]
        %v1715 = vld [vmem:[%s1702 + $0x34] sm:$0xf]
        %v1716 = vld [vmem:[%s1702 + $0x38] sm:$0xf]
        %v1717 = vld [vmem:[%s1702 + $0x3c] sm:$0xf]
        %v1718 = vld [vmem:[%s1702 + $0x40] sm:$0xf]
        %v1719 = vld [vmem:[#allocation3] sm:$0xf]
        %v1720 = vld [vmem:[#allocation3 + $0x4] sm:$0xf]
        %v1721 = vld [vmem:[#allocation3 + $0x8] sm:$0xf]
        %v1722 = vld [vmem:[#allocation3 + $0xc] sm:$0xf]
        %v1723 = vld [vmem:[#allocation3 + $0x10] sm:$0xf]
        %v1724 = vld [vmem:[#allocation3 + $0x14] sm:$0xf]
        %v1725 = vld [vmem:[#allocation3 + $0x18] sm:$0xf]
        %v1726 = vld [vmem:[#allocation3 + $0x1c] sm:$0xf]
        %v1727 = vld [vmem:[#allocation3 + $0x20] sm:$0xf]
        %v1728 = vld [vmem:[#allocation3 + $0x24] sm:$0xf]
        %v1729 = vld [vmem:[#allocation3 + $0x28] sm:$0xf]
        %v1730 = vld [vmem:[#allocation3 + $0x2c] sm:$0xf]
        %v1731 = vld [vmem:[#allocation3 + $0x30] sm:$0xf]
        %v1732 = vld [vmem:[#allocation3 + $0x34] sm:$0xf]
        %v1733 = vld [vmem:[#allocation3 + $0x38] sm:$0xf]
        %v1734 = vld [vmem:[#allocation3 + $0x3c] sm:$0xf]
        %v1735 = vld [vmem:[%s1702] sm:$0x8]
        %v1736 = vld [vmem:[%s515] sm:$0xf]
        %v1737 = vld [vmem:[%s515 + $0x4] sm:$0xf]
        %v1738 = vld [vmem:[%s515 + $0x8] sm:$0xf]
        %v1739 = vld [vmem:[%s515 + $0xc] sm:$0xf]
        %v1740 = vld [vmem:[%s515 + $0x10] sm:$0xf]
        %v1741 = vld [vmem:[%s515 + $0x14] sm:$0xf]
        %v1742 = vld [vmem:[%s515 + $0x18] sm:$0xf]
        %v1743 = vld [vmem:[%s515 + $0x1c] sm:$0xf]
        %v1744 = vld [vmem:[%s515 + $0x20] sm:$0xf]
        %v1745 = vld [vmem:[%s515 + $0x24] sm:$0xf]
        %v1746 = vld [vmem:[%s515 + $0x28] sm:$0xf]
        %v1747 = vld [vmem:[%s515 + $0x2c] sm:$0xf]
        %v1748 = vld [vmem:[%s515 + $0x30] sm:$0xf]
        %v1749 = vld [vmem:[%s515 + $0x34] sm:$0xf]
        %v1750 = vld [vmem:[%s515 + $0x38] sm:$0xf]
        %v1751 = vld [vmem:[%s515 + $0x3c] sm:$0xf]
        %v1769 = vunpack.c.l.b16 %v1735
        %v1770 = vunpack.c.l.b16 %v1703
        %v1771 = vunpack.c.l.b16 %v1704
        %v1772 = vunpack.c.l.b16 %v1705
        %v1773 = vunpack.c.l.b16 %v1706
        %v1774 = vunpack.c.l.b16 %v1707
        %v1775 = vunpack.c.l.b16 %v1708
        %v1776 = vunpack.c.l.b16 %v1709
        %v1777 = vunpack.c.l.b16 %v1710
        %v1778 = vunpack.c.l.b16 %v1711
        %v1779 = vunpack.c.l.b16 %v1712
        %v1780 = vunpack.c.l.b16 %v1713
        %v1781 = vunpack.c.l.b16 %v1714
        %v1782 = vunpack.c.l.b16 %v1715
        %v1783 = vunpack.c.l.b16 %v1716
        %v1784 = vunpack.c.l.b16 %v1717
        %v1785 = vunpack.c.l.b16 %v1718
        %v1786 = vpack.c.b16 %v1770, %v1769
        %v1787 = vpack.c.b16 %v1772, %v1771
        %v1788 = vpack.c.b16 %v1774, %v1773
        %v1789 = vpack.c.b16 %v1776, %v1775
        %v1790 = vpack.c.b16 %v1778, %v1777
        %v1791 = vpack.c.b16 %v1780, %v1779
        %v1792 = vpack.c.b16 %v1782, %v1781
        %v1793 = vpack.c.b16 %v1784, %v1783
        %v1794 = vpack.c.b16 %v1785, %v1785
        %v1796 = vshrl.u32 %v1786, 16
        %v1798 = vrot.slane %v1796, 3
        %v1799 = vshll.u32 %v1786, 16
        %v1801 = vrot.slane %v1799, 4
        %v1802 = vor.u32 %v1798, %v1801
        %v1804 = vshrl.u32 %v1787, 16
        %v1806 = vrot.slane %v1804, 3
        %v1807 = vshll.u32 %v1787, 16
        %v1809 = vrot.slane %v1807, 4
        %v1810 = vor.u32 %v1806, %v1809
        %v1811 = vsel %vm575, %v1802, %v1810
        %v1813 = vshrl.u32 %v1788, 16
        %v1815 = vrot.slane %v1813, 3
        %v1816 = vshll.u32 %v1788, 16
        %v1818 = vrot.slane %v1816, 4
        %v1819 = vor.u32 %v1815, %v1818
        %v1820 = vsel %vm575, %v1810, %v1819
        %v1822 = vshrl.u32 %v1789, 16
        %v1824 = vrot.slane %v1822, 3
        %v1825 = vshll.u32 %v1789, 16
        %v1827 = vrot.slane %v1825, 4
        %v1828 = vor.u32 %v1824, %v1827
        %v1829 = vsel %vm575, %v1819, %v1828
        %v1831 = vshrl.u32 %v1790, 16
        %v1833 = vrot.slane %v1831, 3
        %v1834 = vshll.u32 %v1790, 16
        %v1836 = vrot.slane %v1834, 4
        %v1837 = vor.u32 %v1833, %v1836
        %v1838 = vsel %vm575, %v1828, %v1837
        %v1840 = vshrl.u32 %v1791, 16
        %v1842 = vrot.slane %v1840, 3
        %v1843 = vshll.u32 %v1791, 16
        %v1845 = vrot.slane %v1843, 4
        %v1846 = vor.u32 %v1842, %v1845
        %v1847 = vsel %vm575, %v1837, %v1846
        %v1849 = vshrl.u32 %v1792, 16
        %v1851 = vrot.slane %v1849, 3
        %v1852 = vshll.u32 %v1792, 16
        %v1854 = vrot.slane %v1852, 4
        %v1855 = vor.u32 %v1851, %v1854
        %v1856 = vsel %vm575, %v1846, %v1855
        %v1858 = vshrl.u32 %v1793, 16
        %v1860 = vrot.slane %v1858, 3
        %v1861 = vshll.u32 %v1793, 16
        %v1863 = vrot.slane %v1861, 4
        %v1864 = vor.u32 %v1860, %v1863
        %v1865 = vsel %vm575, %v1855, %v1864
        %v1867 = vshrl.u32 %v1794, 16
        %v1869 = vrot.slane %v1867, 3
        %v1870 = vshll.u32 %v1794, 16
        %v1872 = vrot.slane %v1870, 4
        %v1873 = vor.u32 %v1869, %v1872
        %v1874 = vsel %vm575, %v1864, %v1873
        %v1899 = vunpack.c.l.b16 %v1736
        %v1900 = vunpack.c.l.b16 %v1737
        %v1901 = vunpack.c.l.b16 %v1738
        %v1902 = vunpack.c.l.b16 %v1739
        %v1903 = vunpack.c.l.b16 %v1740
        %v1904 = vunpack.c.l.b16 %v1741
        %v1905 = vunpack.c.l.b16 %v1742
        %v1906 = vunpack.c.l.b16 %v1743
        %v1907 = vunpack.c.l.b16 %v1744
        %v1908 = vunpack.c.l.b16 %v1745
        %v1909 = vunpack.c.l.b16 %v1746
        %v1910 = vunpack.c.l.b16 %v1747
        %v1911 = vunpack.c.l.b16 %v1748
        %v1912 = vunpack.c.l.b16 %v1749
        %v1913 = vunpack.c.l.b16 %v1750
        %v1914 = vunpack.c.l.b16 %v1751
        %v1915 = vpack.c.b16 %v1900, %v1899
        %v1916 = vpack.c.b16 %v1902, %v1901
        %v1917 = vpack.c.b16 %v1904, %v1903
        %v1918 = vpack.c.b16 %v1906, %v1905
        %v1919 = vpack.c.b16 %v1908, %v1907
        %v1920 = vpack.c.b16 %v1910, %v1909
        %v1921 = vpack.c.b16 %v1912, %v1911
        %v1922 = vpack.c.b16 %v1914, %v1913
        %1931 = vmatprep.subr.bf16.mxu0 0
        %1932 = vmatpush1.bf16.msra.mxu0 %v1915
        %1933 = vmatprep.subr.bf16.mxu0 0
        %1934 = vmatpush1.bf16.msra.mxu0 %v1916
        %1935 = vmatprep.subr.bf16.mxu0 0
        %1936 = vmatpush1.bf16.msra.mxu0 %v1917
        %1937 = vmatprep.subr.bf16.mxu0 0
        %1938 = vmatpush1.bf16.msra.mxu0 %v1918
        %1939 = vmatprep.subr.bf16.mxu0 0
        %1940 = vmatpush1.bf16.msra.mxu0 %v1919
        %1941 = vmatprep.subr.bf16.mxu0 0
        %1942 = vmatpush1.bf16.msra.mxu0 %v1920
        %1943 = vmatprep.subr.bf16.mxu0 0
        %1944 = vmatpush1.bf16.msra.mxu0 %v1921
        %1945 = vmatprep.subr.bf16.mxu0 0
        %1946 = vmatpush1.bf16.msra.mxu0 %v1922
        %1947 = vmatprep.subr.bf16.mxu0 0
        %1948 = vmatpush1.bf16.msra.mxu0 0
        %1949 = vmatprep.subr.bf16.mxu0 0
        %1950 = vmatpush1.bf16.msra.mxu0 0
        %1951 = vmatprep.subr.bf16.mxu0 0
        %1952 = vmatpush1.bf16.msra.mxu0 0
        %1953 = vmatprep.subr.bf16.mxu0 0
        %1954 = vmatpush1.bf16.msra.mxu0 0
        %1955 = vmatprep.subr.bf16.mxu0 0
        %1956 = vmatpush1.bf16.msra.mxu0 0
        %1957 = vmatprep.subr.bf16.mxu0 0
        %1958 = vmatpush1.bf16.msra.mxu0 0
        %1959 = vmatprep.subr.bf16.mxu0 0
        %1960 = vmatpush1.bf16.msra.mxu0 0
        %1961 = vmatprep.subr.bf16.mxu0 0
        %1962 = vmatpush1.bf16.msra.mxu0 0
        %1963 = vmatprep.mubr.bf16.mxu0 0
        %1964 = vmatmul.mubr.bf16.gmra.mrb[0].mxu0 %v1811
        %v1965 = vpop.f32.mrb[0].mxu0
        %v1966 = vadd.f32 0.0, %v1965
        %v1967 = vpop.f32.mrb[0].mxu0
        %v1968 = vpop.f32.mrb[0].mxu0
        %v1969 = vadd.f32 0.0, %v1968
        %v1970 = vpop.f32.mrb[0].mxu0
        %1971 = vmatprep.mubr.bf16.mxu0 0
        %1972 = vmatmul.mubr.bf16.gmra.mrb[0].mxu0 %v1820
        %v1973 = vpop.f32.mrb[0].mxu0
        %v1974 = vadd.f32 0.0, %v1973
        %v1975 = vpop.f32.mrb[0].mxu0
        %v1976 = vpop.f32.mrb[0].mxu0
        %v1977 = vadd.f32 0.0, %v1976
        %v1978 = vpop.f32.mrb[0].mxu0
        %1979 = vmatprep.mubr.bf16.mxu0 0
        %1980 = vmatmul.mubr.bf16.gmra.mrb[0].mxu0 %v1829
        %v1981 = vpop.f32.mrb[0].mxu0
        %v1982 = vadd.f32 0.0, %v1981
        %v1983 = vpop.f32.mrb[0].mxu0
        %v1984 = vpop.f32.mrb[0].mxu0
        %v1985 = vadd.f32 0.0, %v1984
        %v1986 = vpop.f32.mrb[0].mxu0
        %1987 = vmatprep.mubr.bf16.mxu0 0
        %1988 = vmatmul.mubr.bf16.gmra.mrb[0].mxu0 %v1838
        %v1989 = vpop.f32.mrb[0].mxu0
        %v1990 = vadd.f32 0.0, %v1989
        %v1991 = vpop.f32.mrb[0].mxu0
        %v1992 = vpop.f32.mrb[0].mxu0
        %v1993 = vadd.f32 0.0, %v1992
        %v1994 = vpop.f32.mrb[0].mxu0
        %1995 = vmatprep.mubr.bf16.mxu0 0
        %1996 = vmatmul.mubr.bf16.gmra.mrb[0].mxu0 %v1847
        %v1997 = vpop.f32.mrb[0].mxu0
        %v1998 = vadd.f32 0.0, %v1997
        %v1999 = vpop.f32.mrb[0].mxu0
        %v2000 = vpop.f32.mrb[0].mxu0
        %v2001 = vadd.f32 0.0, %v2000
        %v2002 = vpop.f32.mrb[0].mxu0
        %2003 = vmatprep.mubr.bf16.mxu0 0
        %2004 = vmatmul.mubr.bf16.gmra.mrb[0].mxu0 %v1856
        %v2005 = vpop.f32.mrb[0].mxu0
        %v2006 = vadd.f32 0.0, %v2005
        %v2007 = vpop.f32.mrb[0].mxu0
        %v2008 = vpop.f32.mrb[0].mxu0
        %v2009 = vadd.f32 0.0, %v2008
        %v2010 = vpop.f32.mrb[0].mxu0
        %2011 = vmatprep.mubr.bf16.mxu0 0
        %2012 = vmatmul.mubr.bf16.gmra.mrb[0].mxu0 %v1865
        %v2013 = vpop.f32.mrb[0].mxu0
        %v2014 = vadd.f32 0.0, %v2013
        %v2015 = vpop.f32.mrb[0].mxu0
        %v2016 = vpop.f32.mrb[0].mxu0
        %v2017 = vadd.f32 0.0, %v2016
        %v2018 = vpop.f32.mrb[0].mxu0
        %2019 = vmatprep.mubr.bf16.mxu0 0
        %2020 = vmatmul.mubr.bf16.gmra.mrb[0].mxu0 %v1874
        %v2021 = vpop.f32.mrb[0].mxu0
        %v2022 = vadd.f32 0.0, %v2021
        %v2023 = vpop.f32.mrb[0].mxu0
        %v2024 = vpop.f32.mrb[0].mxu0
        %v2025 = vadd.f32 0.0, %v2024
        %v2026 = vpop.f32.mrb[0].mxu0
        %2027 = vdwg.mxu0
        %v2028 = vpack.c.b16 %v1771, %v1770
        %v2029 = vpack.c.b16 %v1773, %v1772
        %v2030 = vpack.c.b16 %v1775, %v1774
        %v2031 = vpack.c.b16 %v1777, %v1776
        %v2032 = vpack.c.b16 %v1779, %v1778
        %v2033 = vpack.c.b16 %v1781, %v1780
        %v2034 = vpack.c.b16 %v1783, %v1782
        %v2035 = vpack.c.b16 %v1785, %v1784
        %v2060 = vunpack.c.l.b16 %v1719
        %v2061 = vunpack.c.l.b16 %v1720
        %v2062 = vunpack.c.l.b16 %v1721
        %v2063 = vunpack.c.l.b16 %v1722
        %v2064 = vunpack.c.l.b16 %v1723
        %v2065 = vunpack.c.l.b16 %v1724
        %v2066 = vunpack.c.l.b16 %v1725
        %v2067 = vunpack.c.l.b16 %v1726
        %v2068 = vunpack.c.l.b16 %v1727
        %v2069 = vunpack.c.l.b16 %v1728
        %v2070 = vunpack.c.l.b16 %v1729
        %v2071 = vunpack.c.l.b16 %v1730
        %v2072 = vunpack.c.l.b16 %v1731
        %v2073 = vunpack.c.l.b16 %v1732
        %v2074 = vunpack.c.l.b16 %v1733
        %v2075 = vunpack.c.l.b16 %v1734
        %v2076 = vpack.c.b16 %v2061, %v2060
        %v2077 = vpack.c.b16 %v2063, %v2062
        %v2078 = vpack.c.b16 %v2065, %v2064
        %v2079 = vpack.c.b16 %v2067, %v2066
        %v2080 = vpack.c.b16 %v2069, %v2068
        %v2081 = vpack.c.b16 %v2071, %v2070
        %v2082 = vpack.c.b16 %v2073, %v2072
        %v2083 = vpack.c.b16 %v2075, %v2074
        %2092 = vmatprep.subr.bf16.mxu0 0
        %2093 = vmatpush1.bf16.msra.mxu0 %v2076
        %2094 = vmatprep.subr.bf16.mxu0 0
        %2095 = vmatpush1.bf16.msra.mxu0 %v2077
        %2096 = vmatprep.subr.bf16.mxu0 0
        %2097 = vmatpush1.bf16.msra.mxu0 %v2078
        %2098 = vmatprep.subr.bf16.mxu0 0
        %2099 = vmatpush1.bf16.msra.mxu0 %v2079
        %2100 = vmatprep.subr.bf16.mxu0 0
        %2101 = vmatpush1.bf16.msra.mxu0 %v2080
        %2102 = vmatprep.subr.bf16.mxu0 0
        %2103 = vmatpush1.bf16.msra.mxu0 %v2081
        %2104 = vmatprep.subr.bf16.mxu0 0
        %2105 = vmatpush1.bf16.msra.mxu0 %v2082
        %2106 = vmatprep.subr.bf16.mxu0 0
        %2107 = vmatpush1.bf16.msra.mxu0 %v2083
        %2108 = vmatprep.subr.bf16.mxu0 0
        %2109 = vmatpush1.bf16.msra.mxu0 0
        %2110 = vmatprep.subr.bf16.mxu0 0
        %2111 = vmatpush1.bf16.msra.mxu0 0
        %2112 = vmatprep.subr.bf16.mxu0 0
        %2113 = vmatpush1.bf16.msra.mxu0 0
        %2114 = vmatprep.subr.bf16.mxu0 0
        %2115 = vmatpush1.bf16.msra.mxu0 0
        %2116 = vmatprep.subr.bf16.mxu0 0
        %2117 = vmatpush1.bf16.msra.mxu0 0
        %2118 = vmatprep.subr.bf16.mxu0 0
        %2119 = vmatpush1.bf16.msra.mxu0 0
        %2120 = vmatprep.subr.bf16.mxu0 0
        %2121 = vmatpush1.bf16.msra.mxu0 0
        %2122 = vmatprep.subr.bf16.mxu0 0
        %2123 = vmatpush1.bf16.msra.mxu0 0
        %2124 = vmatprep.mubr.bf16.mxu0 0
        %2125 = vmatmul.mubr.bf16.gmra.mrb[0].mxu0 %v2028
        %v2126 = vpop.f32.mrb[0].mxu0
        %v2127 = vadd.f32 %v1966, %v2126
        %v2128 = vpop.f32.mrb[0].mxu0
        %v2129 = vpop.f32.mrb[0].mxu0
        %v2130 = vadd.f32 %v1969, %v2129
        %v2131 = vpop.f32.mrb[0].mxu0
        %2132 = vmatprep.mubr.bf16.mxu0 0
        %2133 = vmatmul.mubr.bf16.gmra.mrb[0].mxu0 %v2029
        %v2134 = vpop.f32.mrb[0].mxu0
        %v2135 = vadd.f32 %v1974, %v2134
        %v2136 = vpop.f32.mrb[0].mxu0
        %v2137 = vpop.f32.mrb[0].mxu0
        %v2138 = vadd.f32 %v1977, %v2137
        %v2139 = vpop.f32.mrb[0].mxu0
        %2140 = vmatprep.mubr.bf16.mxu0 0
        %2141 = vmatmul.mubr.bf16.gmra.mrb[0].mxu0 %v2030
        %v2142 = vpop.f32.mrb[0].mxu0
        %v2143 = vadd.f32 %v1982, %v2142
        %v2144 = vpop.f32.mrb[0].mxu0
        %v2145 = vpop.f32.mrb[0].mxu0
        %v2146 = vadd.f32 %v1985, %v2145
        %v2147 = vpop.f32.mrb[0].mxu0
        %2148 = vmatprep.mubr.bf16.mxu0 0
        %2149 = vmatmul.mubr.bf16.gmra.mrb[0].mxu0 %v2031
        %v2150 = vpop.f32.mrb[0].mxu0
        %v2151 = vadd.f32 %v1990, %v2150
        %v2152 = vpop.f32.mrb[0].mxu0
        %v2153 = vpop.f32.mrb[0].mxu0
        %v2154 = vadd.f32 %v1993, %v2153
        %v2155 = vpop.f32.mrb[0].mxu0
        %2156 = vmatprep.mubr.bf16.mxu0 0
        %2157 = vmatmul.mubr.bf16.gmra.mrb[0].mxu0 %v2032
        %v2158 = vpop.f32.mrb[0].mxu0
        %v2159 = vadd.f32 %v1998, %v2158
        %v2160 = vpop.f32.mrb[0].mxu0
        %v2161 = vpop.f32.mrb[0].mxu0
        %v2162 = vadd.f32 %v2001, %v2161
        %v2163 = vpop.f32.mrb[0].mxu0
        %2164 = vmatprep.mubr.bf16.mxu0 0
        %2165 = vmatmul.mubr.bf16.gmra.mrb[0].mxu0 %v2033
        %v2166 = vpop.f32.mrb[0].mxu0
        %v2167 = vadd.f32 %v2006, %v2166
        %v2168 = vpop.f32.mrb[0].mxu0
        %v2169 = vpop.f32.mrb[0].mxu0
        %v2170 = vadd.f32 %v2009, %v2169
        %v2171 = vpop.f32.mrb[0].mxu0
        %2172 = vmatprep.mubr.bf16.mxu0 0
        %2173 = vmatmul.mubr.bf16.gmra.mrb[0].mxu0 %v2034
        %v2174 = vpop.f32.mrb[0].mxu0
        %v2175 = vadd.f32 %v2014, %v2174
        %v2176 = vpop.f32.mrb[0].mxu0
        %v2177 = vpop.f32.mrb[0].mxu0
        %v2178 = vadd.f32 %v2017, %v2177
        %v2179 = vpop.f32.mrb[0].mxu0
        %2180 = vmatprep.mubr.bf16.mxu0 0
        %2181 = vmatmul.mubr.bf16.gmra.mrb[0].mxu0 %v2035
        %v2182 = vpop.f32.mrb[0].mxu0
        %v2183 = vadd.f32 %v2022, %v2182
        %v2184 = vpop.f32.mrb[0].mxu0
        %v2185 = vpop.f32.mrb[0].mxu0
        %v2186 = vadd.f32 %v2025, %v2185
        %v2187 = vpop.f32.mrb[0].mxu0
        %2188 = vdwg.mxu0
        %v2189 = vld [vmem:[%s1702 + $0x40] sm:$0x7]
        %v2190 = vld [vmem:[%s971] sm:$0xf]
        %v2191 = vld [vmem:[%s971 + $0x4] sm:$0xf]
        %v2192 = vld [vmem:[%s971 + $0x8] sm:$0xf]
        %v2193 = vld [vmem:[%s971 + $0xc] sm:$0xf]
        %v2194 = vld [vmem:[%s971 + $0x10] sm:$0xf]
        %v2195 = vld [vmem:[%s971 + $0x14] sm:$0xf]
        %v2196 = vld [vmem:[%s971 + $0x18] sm:$0xf]
        %v2197 = vld [vmem:[%s971 + $0x1c] sm:$0xf]
        %v2198 = vld [vmem:[%s971 + $0x20] sm:$0xf]
        %v2199 = vld [vmem:[%s971 + $0x24] sm:$0xf]
        %v2200 = vld [vmem:[%s971 + $0x28] sm:$0xf]
        %v2201 = vld [vmem:[%s971 + $0x2c] sm:$0xf]
        %v2202 = vld [vmem:[%s971 + $0x30] sm:$0xf]
        %v2203 = vld [vmem:[%s971 + $0x34] sm:$0xf]
        %v2204 = vld [vmem:[%s971 + $0x38] sm:$0xf]
        %v2205 = vld [vmem:[%s971 + $0x3c] sm:$0xf]
        %v2207 = vunpack.c.l.b16 %v2189
        %v2208 = vpack.c.b16 %v2207, %v2207
        %v2209 = vrot.slane %v1786, 3
        %v2210 = vrot.slane %v1787, 3
        %v2211 = vsel %vm991, %v2209, %v2210
        %v2212 = vrot.slane %v1788, 3
        %v2213 = vsel %vm991, %v2210, %v2212
        %v2214 = vrot.slane %v1789, 3
        %v2215 = vsel %vm991, %v2212, %v2214
        %v2216 = vrot.slane %v1790, 3
        %v2217 = vsel %vm991, %v2214, %v2216
        %v2218 = vrot.slane %v1791, 3
        %v2219 = vsel %vm991, %v2216, %v2218
        %v2220 = vrot.slane %v1792, 3
        %v2221 = vsel %vm991, %v2218, %v2220
        %v2222 = vrot.slane %v1793, 3
        %v2223 = vsel %vm991, %v2220, %v2222
        %v2224 = vrot.slane %v2208, 3
        %v2225 = vsel %vm991, %v2222, %v2224
        %v2250 = vunpack.c.l.b16 %v2190
        %v2251 = vunpack.c.l.b16 %v2191
        %v2252 = vunpack.c.l.b16 %v2192
        %v2253 = vunpack.c.l.b16 %v2193
        %v2254 = vunpack.c.l.b16 %v2194
        %v2255 = vunpack.c.l.b16 %v2195
        %v2256 = vunpack.c.l.b16 %v2196
        %v2257 = vunpack.c.l.b16 %v2197
        %v2258 = vunpack.c.l.b16 %v2198
        %v2259 = vunpack.c.l.b16 %v2199
        %v2260 = vunpack.c.l.b16 %v2200
        %v2261 = vunpack.c.l.b16 %v2201
        %v2262 = vunpack.c.l.b16 %v2202
        %v2263 = vunpack.c.l.b16 %v2203
        %v2264 = vunpack.c.l.b16 %v2204
        %v2265 = vunpack.c.l.b16 %v2205
        %v2266 = vpack.c.b16 %v2251, %v2250
        %v2267 = vpack.c.b16 %v2253, %v2252
        %v2268 = vpack.c.b16 %v2255, %v2254
        %v2269 = vpack.c.b16 %v2257, %v2256
        %v2270 = vpack.c.b16 %v2259, %v2258
        %v2271 = vpack.c.b16 %v2261, %v2260
        %v2272 = vpack.c.b16 %v2263, %v2262
        %v2273 = vpack.c.b16 %v2265, %v2264
        %2282 = vmatprep.subr.bf16.mxu0 0
        %2283 = vmatpush1.bf16.msra.mxu0 %v2266
        %2284 = vmatprep.subr.bf16.mxu0 0
        %2285 = vmatpush1.bf16.msra.mxu0 %v2267
        %2286 = vmatprep.subr.bf16.mxu0 0
        %2287 = vmatpush1.bf16.msra.mxu0 %v2268
        %2288 = vmatprep.subr.bf16.mxu0 0
        %2289 = vmatpush1.bf16.msra.mxu0 %v2269
        %2290 = vmatprep.subr.bf16.mxu0 0
        %2291 = vmatpush1.bf16.msra.mxu0 %v2270
        %2292 = vmatprep.subr.bf16.mxu0 0
        %2293 = vmatpush1.bf16.msra.mxu0 %v2271
        %2294 = vmatprep.subr.bf16.mxu0 0
        %2295 = vmatpush1.bf16.msra.mxu0 %v2272
        %2296 = vmatprep.subr.bf16.mxu0 0
        %2297 = vmatpush1.bf16.msra.mxu0 %v2273
        %2298 = vmatprep.subr.bf16.mxu0 0
        %2299 = vmatpush1.bf16.msra.mxu0 0
        %2300 = vmatprep.subr.bf16.mxu0 0
        %2301 = vmatpush1.bf16.msra.mxu0 0
        %2302 = vmatprep.subr.bf16.mxu0 0
        %2303 = vmatpush1.bf16.msra.mxu0 0
        %2304 = vmatprep.subr.bf16.mxu0 0
        %2305 = vmatpush1.bf16.msra.mxu0 0
        %2306 = vmatprep.subr.bf16.mxu0 0
        %2307 = vmatpush1.bf16.msra.mxu0 0
        %2308 = vmatprep.subr.bf16.mxu0 0
        %2309 = vmatpush1.bf16.msra.mxu0 0
        %2310 = vmatprep.subr.bf16.mxu0 0
        %2311 = vmatpush1.bf16.msra.mxu0 0
        %2312 = vmatprep.subr.bf16.mxu0 0
        %2313 = vmatpush1.bf16.msra.mxu0 0
        %2314 = vmatprep.mubr.bf16.mxu0 0
        %2315 = vmatmul.mubr.bf16.gmra.mrb[0].mxu0 %v2211
        %v2316 = vpop.f32.mrb[0].mxu0
        %v2317 = vadd.f32 0.0, %v2316
        %v2318 = vpop.f32.mrb[0].mxu0
        %v2319 = vpop.f32.mrb[0].mxu0
        %v2320 = vadd.f32 0.0, %v2319
        %v2321 = vpop.f32.mrb[0].mxu0
        %2322 = vmatprep.mubr.bf16.mxu0 0
        %2323 = vmatmul.mubr.bf16.gmra.mrb[0].mxu0 %v2213
        %v2324 = vpop.f32.mrb[0].mxu0
        %v2325 = vadd.f32 0.0, %v2324
        %v2326 = vpop.f32.mrb[0].mxu0
        %v2327 = vpop.f32.mrb[0].mxu0
        %v2328 = vadd.f32 0.0, %v2327
        %v2329 = vpop.f32.mrb[0].mxu0
        %2330 = vmatprep.mubr.bf16.mxu0 0
        %2331 = vmatmul.mubr.bf16.gmra.mrb[0].mxu0 %v2215
        %v2332 = vpop.f32.mrb[0].mxu0
        %v2333 = vadd.f32 0.0, %v2332
        %v2334 = vpop.f32.mrb[0].mxu0
        %v2335 = vpop.f32.mrb[0].mxu0
        %v2336 = vadd.f32 0.0, %v2335
        %v2337 = vpop.f32.mrb[0].mxu0
        %2338 = vmatprep.mubr.bf16.mxu0 0
        %2339 = vmatmul.mubr.bf16.gmra.mrb[0].mxu0 %v2217
        %v2340 = vpop.f32.mrb[0].mxu0
        %v2341 = vadd.f32 0.0, %v2340
        %v2342 = vpop.f32.mrb[0].mxu0
        %v2343 = vpop.f32.mrb[0].mxu0
        %v2344 = vadd.f32 0.0, %v2343
        %v2345 = vpop.f32.mrb[0].mxu0
        %2346 = vmatprep.mubr.bf16.mxu0 0
        %2347 = vmatmul.mubr.bf16.gmra.mrb[0].mxu0 %v2219
        %v2348 = vpop.f32.mrb[0].mxu0
        %v2349 = vadd.f32 0.0, %v2348
        %v2350 = vpop.f32.mrb[0].mxu0
        %v2351 = vpop.f32.mrb[0].mxu0
        %v2352 = vadd.f32 0.0, %v2351
        %v2353 = vpop.f32.mrb[0].mxu0
        %2354 = vmatprep.mubr.bf16.mxu0 0
        %2355 = vmatmul.mubr.bf16.gmra.mrb[0].mxu0 %v2221
        %v2356 = vpop.f32.mrb[0].mxu0
        %v2357 = vadd.f32 0.0, %v2356
        %v2358 = vpop.f32.mrb[0].mxu0
        %v2359 = vpop.f32.mrb[0].mxu0
        %v2360 = vadd.f32 0.0, %v2359
        %v2361 = vpop.f32.mrb[0].mxu0
        %2362 = vmatprep.mubr.bf16.mxu0 0
        %2363 = vmatmul.mubr.bf16.gmra.mrb[0].mxu0 %v2223
        %v2364 = vpop.f32.mrb[0].mxu0
        %v2365 = vadd.f32 0.0, %v2364
        %v2366 = vpop.f32.mrb[0].mxu0
        %v2367 = vpop.f32.mrb[0].mxu0
        %v2368 = vadd.f32 0.0, %v2367
        %v2369 = vpop.f32.mrb[0].mxu0
        %2370 = vmatprep.mubr.bf16.mxu0 0
        %2371 = vmatmul.mubr.bf16.gmra.mrb[0].mxu0 %v2225
        %v2372 = vpop.f32.mrb[0].mxu0
        %v2373 = vadd.f32 0.0, %v2372
        %v2374 = vpop.f32.mrb[0].mxu0
        %v2375 = vpop.f32.mrb[0].mxu0
        %v2376 = vadd.f32 0.0, %v2375
        %v2377 = vpop.f32.mrb[0].mxu0
        %2378 = vdwg.mxu0
        %v2379 = vadd.f32 %v2127, %v2317
        %v2380 = vadd.f32 %v2130, %v2320
        %v2381 = vadd.f32 %v2135, %v2325
        %v2382 = vadd.f32 %v2138, %v2328
        %v2383 = vadd.f32 %v2143, %v2333
        %v2384 = vadd.f32 %v2146, %v2336
        %v2385 = vadd.f32 %v2151, %v2341
        %v2386 = vadd.f32 %v2154, %v2344
        %v2387 = vadd.f32 %v2159, %v2349
        %v2388 = vadd.f32 %v2162, %v2352
        %v2389 = vadd.f32 %v2167, %v2357
        %v2390 = vadd.f32 %v2170, %v2360
        %v2391 = vadd.f32 %v2175, %v2365
        %v2392 = vadd.f32 %v2178, %v2368
        %v2393 = vadd.f32 %v2183, %v2373
        %v2394 = vadd.f32 %v2186, %v2376
        %v2395 = vld [vmem:[%s1702] sm:$0xc]
        %v2396 = vld [vmem:[%s1179] sm:$0xf]
        %v2397 = vld [vmem:[%s1179 + $0x4] sm:$0xf]
        %v2398 = vld [vmem:[%s1179 + $0x8] sm:$0xf]
        %v2399 = vld [vmem:[%s1179 + $0xc] sm:$0xf]
        %v2400 = vld [vmem:[%s1179 + $0x10] sm:$0xf]
        %v2401 = vld [vmem:[%s1179 + $0x14] sm:$0xf]
        %v2402 = vld [vmem:[%s1179 + $0x18] sm:$0xf]
        %v2403 = vld [vmem:[%s1179 + $0x1c] sm:$0xf]
        %v2404 = vld [vmem:[%s1179 + $0x20] sm:$0xf]
        %v2405 = vld [vmem:[%s1179 + $0x24] sm:$0xf]
        %v2406 = vld [vmem:[%s1179 + $0x28] sm:$0xf]
        %v2407 = vld [vmem:[%s1179 + $0x2c] sm:$0xf]
        %v2408 = vld [vmem:[%s1179 + $0x30] sm:$0xf]
        %v2409 = vld [vmem:[%s1179 + $0x34] sm:$0xf]
        %v2410 = vld [vmem:[%s1179 + $0x38] sm:$0xf]
        %v2411 = vld [vmem:[%s1179 + $0x3c] sm:$0xf]
        %v2413 = vunpack.c.l.b16 %v2395
        %v2414 = vpack.c.b16 %v1770, %v2413
        %v2416 = vshrl.u32 %v2414, 16
        %v2418 = vrot.slane %v2416, 2
        %v2419 = vshll.u32 %v2414, 16
        %v2421 = vrot.slane %v2419, 3
        %v2422 = vor.u32 %v2418, %v2421
        %v2423 = vrot.slane %v1804, 2
        %v2424 = vrot.slane %v1807, 3
        %v2425 = vor.u32 %v2423, %v2424
        %v2426 = vsel %vm1199, %v2422, %v2425
        %v2427 = vrot.slane %v1813, 2
        %v2428 = vrot.slane %v1816, 3
        %v2429 = vor.u32 %v2427, %v2428
        %v2430 = vsel %vm1199, %v2425, %v2429
        %v2431 = vrot.slane %v1822, 2
        %v2432 = vrot.slane %v1825, 3
        %v2433 = vor.u32 %v2431, %v2432
        %v2434 = vsel %vm1199, %v2429, %v2433
        %v2435 = vrot.slane %v1831, 2
        %v2436 = vrot.slane %v1834, 3
        %v2437 = vor.u32 %v2435, %v2436
        %v2438 = vsel %vm1199, %v2433, %v2437
        %v2439 = vrot.slane %v1840, 2
        %v2440 = vrot.slane %v1843, 3
        %v2441 = vor.u32 %v2439, %v2440
        %v2442 = vsel %vm1199, %v2437, %v2441
        %v2443 = vrot.slane %v1849, 2
        %v2444 = vrot.slane %v1852, 3
        %v2445 = vor.u32 %v2443, %v2444
        %v2446 = vsel %vm1199, %v2441, %v2445
        %v2447 = vrot.slane %v1858, 2
        %v2448 = vrot.slane %v1861, 3
        %v2449 = vor.u32 %v2447, %v2448
        %v2450 = vsel %vm1199, %v2445, %v2449
        %v2452 = vshrl.u32 %v2208, 16
        %v2454 = vrot.slane %v2452, 2
        %v2455 = vshll.u32 %v2208, 16
        %v2457 = vrot.slane %v2455, 3
        %v2458 = vor.u32 %v2454, %v2457
        %v2459 = vsel %vm1199, %v2449, %v2458
        %v2484 = vunpack.c.l.b16 %v2396
        %v2485 = vunpack.c.l.b16 %v2397
        %v2486 = vunpack.c.l.b16 %v2398
        %v2487 = vunpack.c.l.b16 %v2399
        %v2488 = vunpack.c.l.b16 %v2400
        %v2489 = vunpack.c.l.b16 %v2401
        %v2490 = vunpack.c.l.b16 %v2402
        %v2491 = vunpack.c.l.b16 %v2403
        %v2492 = vunpack.c.l.b16 %v2404
        %v2493 = vunpack.c.l.b16 %v2405
        %v2494 = vunpack.c.l.b16 %v2406
        %v2495 = vunpack.c.l.b16 %v2407
        %v2496 = vunpack.c.l.b16 %v2408
        %v2497 = vunpack.c.l.b16 %v2409
        %v2498 = vunpack.c.l.b16 %v2410
        %v2499 = vunpack.c.l.b16 %v2411
        %v2500 = vpack.c.b16 %v2485, %v2484
        %v2501 = vpack.c.b16 %v2487, %v2486
        %v2502 = vpack.c.b16 %v2489, %v2488
        %v2503 = vpack.c.b16 %v2491, %v2490
        %v2504 = vpack.c.b16 %v2493, %v2492
        %v2505 = vpack.c.b16 %v2495, %v2494
        %v2506 = vpack.c.b16 %v2497, %v2496
        %v2507 = vpack.c.b16 %v2499, %v2498
        %2516 = vmatprep.subr.bf16.mxu0 0
        %2517 = vmatpush1.bf16.msra.mxu0 %v2500
        %2518 = vmatprep.subr.bf16.mxu0 0
        %2519 = vmatpush1.bf16.msra.mxu0 %v2501
        %2520 = vmatprep.subr.bf16.mxu0 0
        %2521 = vmatpush1.bf16.msra.mxu0 %v2502
        %2522 = vmatprep.subr.bf16.mxu0 0
        %2523 = vmatpush1.bf16.msra.mxu0 %v2503
        %2524 = vmatprep.subr.bf16.mxu0 0
        %2525 = vmatpush1.bf16.msra.mxu0 %v2504
        %2526 = vmatprep.subr.bf16.mxu0 0
        %2527 = vmatpush1.bf16.msra.mxu0 %v2505
        %2528 = vmatprep.subr.bf16.mxu0 0
        %2529 = vmatpush1.bf16.msra.mxu0 %v2506
        %2530 = vmatprep.subr.bf16.mxu0 0
        %2531 = vmatpush1.bf16.msra.mxu0 %v2507
        %2532 = vmatprep.subr.bf16.mxu0 0
        %2533 = vmatpush1.bf16.msra.mxu0 0
        %2534 = vmatprep.subr.bf16.mxu0 0
        %2535 = vmatpush1.bf16.msra.mxu0 0
        %2536 = vmatprep.subr.bf16.mxu0 0
        %2537 = vmatpush1.bf16.msra.mxu0 0
        %2538 = vmatprep.subr.bf16.mxu0 0
        %2539 = vmatpush1.bf16.msra.mxu0 0
        %2540 = vmatprep.subr.bf16.mxu0 0
        %2541 = vmatpush1.bf16.msra.mxu0 0
        %2542 = vmatprep.subr.bf16.mxu0 0
        %2543 = vmatpush1.bf16.msra.mxu0 0
        %2544 = vmatprep.subr.bf16.mxu0 0
        %2545 = vmatpush1.bf16.msra.mxu0 0
        %2546 = vmatprep.subr.bf16.mxu0 0
        %2547 = vmatpush1.bf16.msra.mxu0 0
        %2548 = vmatprep.mubr.bf16.mxu0 0
        %2549 = vmatmul.mubr.bf16.gmra.mrb[0].mxu0 %v2426
        %v2550 = vpop.f32.mrb[0].mxu0
        %v2551 = vadd.f32 0.0, %v2550
        %v2552 = vpop.f32.mrb[0].mxu0
        %v2553 = vpop.f32.mrb[0].mxu0
        %v2554 = vadd.f32 0.0, %v2553
        %v2555 = vpop.f32.mrb[0].mxu0
        %2556 = vmatprep.mubr.bf16.mxu0 0
        %2557 = vmatmul.mubr.bf16.gmra.mrb[0].mxu0 %v2430
        %v2558 = vpop.f32.mrb[0].mxu0
        %v2559 = vadd.f32 0.0, %v2558
        %v2560 = vpop.f32.mrb[0].mxu0
        %v2561 = vpop.f32.mrb[0].mxu0
        %v2562 = vadd.f32 0.0, %v2561
        %v2563 = vpop.f32.mrb[0].mxu0
        %2564 = vmatprep.mubr.bf16.mxu0 0
        %2565 = vmatmul.mubr.bf16.gmra.mrb[0].mxu0 %v2434
        %v2566 = vpop.f32.mrb[0].mxu0
        %v2567 = vadd.f32 0.0, %v2566
        %v2568 = vpop.f32.mrb[0].mxu0
        %v2569 = vpop.f32.mrb[0].mxu0
        %v2570 = vadd.f32 0.0, %v2569
        %v2571 = vpop.f32.mrb[0].mxu0
        %2572 = vmatprep.mubr.bf16.mxu0 0
        %2573 = vmatmul.mubr.bf16.gmra.mrb[0].mxu0 %v2438
        %v2574 = vpop.f32.mrb[0].mxu0
        %v2575 = vadd.f32 0.0, %v2574
        %v2576 = vpop.f32.mrb[0].mxu0
        %v2577 = vpop.f32.mrb[0].mxu0
        %v2578 = vadd.f32 0.0, %v2577
        %v2579 = vpop.f32.mrb[0].mxu0
        %2580 = vmatprep.mubr.bf16.mxu0 0
        %2581 = vmatmul.mubr.bf16.gmra.mrb[0].mxu0 %v2442
        %v2582 = vpop.f32.mrb[0].mxu0
        %v2583 = vadd.f32 0.0, %v2582
        %v2584 = vpop.f32.mrb[0].mxu0
        %v2585 = vpop.f32.mrb[0].mxu0
        %v2586 = vadd.f32 0.0, %v2585
        %v2587 = vpop.f32.mrb[0].mxu0
        %2588 = vmatprep.mubr.bf16.mxu0 0
        %2589 = vmatmul.mubr.bf16.gmra.mrb[0].mxu0 %v2446
        %v2590 = vpop.f32.mrb[0].mxu0
        %v2591 = vadd.f32 0.0, %v2590
        %v2592 = vpop.f32.mrb[0].mxu0
        %v2593 = vpop.f32.mrb[0].mxu0
        %v2594 = vadd.f32 0.0, %v2593
        %v2595 = vpop.f32.mrb[0].mxu0
        %2596 = vmatprep.mubr.bf16.mxu0 0
        %2597 = vmatmul.mubr.bf16.gmra.mrb[0].mxu0 %v2450
        %v2598 = vpop.f32.mrb[0].mxu0
        %v2599 = vadd.f32 0.0, %v2598
        %v2600 = vpop.f32.mrb[0].mxu0
        %v2601 = vpop.f32.mrb[0].mxu0
        %v2602 = vadd.f32 0.0, %v2601
        %v2603 = vpop.f32.mrb[0].mxu0
        %2604 = vmatprep.mubr.bf16.mxu0 0
        %2605 = vmatmul.mubr.bf16.gmra.mrb[0].mxu0 %v2459
        %v2606 = vpop.f32.mrb[0].mxu0
        %v2607 = vadd.f32 0.0, %v2606
        %v2608 = vpop.f32.mrb[0].mxu0
        %v2609 = vpop.f32.mrb[0].mxu0
        %v2610 = vadd.f32 0.0, %v2609
        %v2611 = vpop.f32.mrb[0].mxu0
        %2612 = vdwg.mxu0
        %v2613 = vadd.f32 %v2379, %v2551
        %v2614 = vadd.f32 %v2380, %v2554
        %v2615 = vadd.f32 %v2381, %v2559
        %v2616 = vadd.f32 %v2382, %v2562
        %v2617 = vadd.f32 %v2383, %v2567
        %v2618 = vadd.f32 %v2384, %v2570
        %v2619 = vadd.f32 %v2385, %v2575
        %v2620 = vadd.f32 %v2386, %v2578
        %v2621 = vadd.f32 %v2387, %v2583
        %v2622 = vadd.f32 %v2388, %v2586
        %v2623 = vadd.f32 %v2389, %v2591
        %v2624 = vadd.f32 %v2390, %v2594
        %v2625 = vadd.f32 %v2391, %v2599
        %v2626 = vadd.f32 %v2392, %v2602
        %v2627 = vadd.f32 %v2393, %v2607
        %v2628 = vadd.f32 %v2394, %v2610
        %v2629 = vld [vmem:[%s1702 + $0x40] sm:$0x3]
        %v2630 = vld [vmem:[%s1415] sm:$0xf]
        %v2631 = vld [vmem:[%s1415 + $0x4] sm:$0xf]
        %v2632 = vld [vmem:[%s1415 + $0x8] sm:$0xf]
        %v2633 = vld [vmem:[%s1415 + $0xc] sm:$0xf]
        %v2634 = vld [vmem:[%s1415 + $0x10] sm:$0xf]
        %v2635 = vld [vmem:[%s1415 + $0x14] sm:$0xf]
        %v2636 = vld [vmem:[%s1415 + $0x18] sm:$0xf]
        %v2637 = vld [vmem:[%s1415 + $0x1c] sm:$0xf]
        %v2638 = vld [vmem:[%s1415 + $0x20] sm:$0xf]
        %v2639 = vld [vmem:[%s1415 + $0x24] sm:$0xf]
        %v2640 = vld [vmem:[%s1415 + $0x28] sm:$0xf]
        %v2641 = vld [vmem:[%s1415 + $0x2c] sm:$0xf]
        %v2642 = vld [vmem:[%s1415 + $0x30] sm:$0xf]
        %v2643 = vld [vmem:[%s1415 + $0x34] sm:$0xf]
        %v2644 = vld [vmem:[%s1415 + $0x38] sm:$0xf]
        %v2645 = vld [vmem:[%s1415 + $0x3c] sm:$0xf]
        %v2647 = vunpack.c.l.b16 %v2629
        %v2648 = vpack.c.b16 %v2647, %v2647
        %v2649 = vrot.slane %v2414, 2
        %v2650 = vrot.slane %v1787, 2
        %v2651 = vsel %vm1435, %v2649, %v2650
        %v2652 = vrot.slane %v1788, 2
        %v2653 = vsel %vm1435, %v2650, %v2652
        %v2654 = vrot.slane %v1789, 2
        %v2655 = vsel %vm1435, %v2652, %v2654
        %v2656 = vrot.slane %v1790, 2
        %v2657 = vsel %vm1435, %v2654, %v2656
        %v2658 = vrot.slane %v1791, 2
        %v2659 = vsel %vm1435, %v2656, %v2658
        %v2660 = vrot.slane %v1792, 2
        %v2661 = vsel %vm1435, %v2658, %v2660
        %v2662 = vrot.slane %v1793, 2
        %v2663 = vsel %vm1435, %v2660, %v2662
        %v2664 = vrot.slane %v2648, 2
        %v2665 = vsel %vm1435, %v2662, %v2664
        %v2690 = vunpack.c.l.b16 %v2630
        %v2691 = vunpack.c.l.b16 %v2631
        %v2692 = vunpack.c.l.b16 %v2632
        %v2693 = vunpack.c.l.b16 %v2633
        %v2694 = vunpack.c.l.b16 %v2634
        %v2695 = vunpack.c.l.b16 %v2635
        %v2696 = vunpack.c.l.b16 %v2636
        %v2697 = vunpack.c.l.b16 %v2637
        %v2698 = vunpack.c.l.b16 %v2638
        %v2699 = vunpack.c.l.b16 %v2639
        %v2700 = vunpack.c.l.b16 %v2640
        %v2701 = vunpack.c.l.b16 %v2641
        %v2702 = vunpack.c.l.b16 %v2642
        %v2703 = vunpack.c.l.b16 %v2643
        %v2704 = vunpack.c.l.b16 %v2644
        %v2705 = vunpack.c.l.b16 %v2645
        %v2706 = vpack.c.b16 %v2691, %v2690
        %v2707 = vpack.c.b16 %v2693, %v2692
        %v2708 = vpack.c.b16 %v2695, %v2694
        %v2709 = vpack.c.b16 %v2697, %v2696
        %v2710 = vpack.c.b16 %v2699, %v2698
        %v2711 = vpack.c.b16 %v2701, %v2700
        %v2712 = vpack.c.b16 %v2703, %v2702
        %v2713 = vpack.c.b16 %v2705, %v2704
        %2722 = vmatprep.subr.bf16.mxu0 0
        %2723 = vmatpush1.bf16.msra.mxu0 %v2706
        %2724 = vmatprep.subr.bf16.mxu0 0
        %2725 = vmatpush1.bf16.msra.mxu0 %v2707
        %2726 = vmatprep.subr.bf16.mxu0 0
        %2727 = vmatpush1.bf16.msra.mxu0 %v2708
        %2728 = vmatprep.subr.bf16.mxu0 0
        %2729 = vmatpush1.bf16.msra.mxu0 %v2709
        %2730 = vmatprep.subr.bf16.mxu0 0
        %2731 = vmatpush1.bf16.msra.mxu0 %v2710
        %2732 = vmatprep.subr.bf16.mxu0 0
        %2733 = vmatpush1.bf16.msra.mxu0 %v2711
        %2734 = vmatprep.subr.bf16.mxu0 0
        %2735 = vmatpush1.bf16.msra.mxu0 %v2712
        %2736 = vmatprep.subr.bf16.mxu0 0
        %2737 = vmatpush1.bf16.msra.mxu0 %v2713
        %2738 = vmatprep.subr.bf16.mxu0 0
        %2739 = vmatpush1.bf16.msra.mxu0 0
        %2740 = vmatprep.subr.bf16.mxu0 0
        %2741 = vmatpush1.bf16.msra.mxu0 0
        %2742 = vmatprep.subr.bf16.mxu0 0
        %2743 = vmatpush1.bf16.msra.mxu0 0
        %2744 = vmatprep.subr.bf16.mxu0 0
        %2745 = vmatpush1.bf16.msra.mxu0 0
        %2746 = vmatprep.subr.bf16.mxu0 0
        %2747 = vmatpush1.bf16.msra.mxu0 0
        %2748 = vmatprep.subr.bf16.mxu0 0
        %2749 = vmatpush1.bf16.msra.mxu0 0
        %2750 = vmatprep.subr.bf16.mxu0 0
        %2751 = vmatpush1.bf16.msra.mxu0 0
        %2752 = vmatprep.subr.bf16.mxu0 0
        %2753 = vmatpush1.bf16.msra.mxu0 0
        %2754 = vmatprep.mubr.bf16.mxu0 0
        %2755 = vmatmul.mubr.bf16.gmra.mrb[0].mxu0 %v2651
        %v2756 = vpop.f32.mrb[0].mxu0
        %v2757 = vadd.f32 0.0, %v2756
        %v2758 = vpop.f32.mrb[0].mxu0
        %v2759 = vpop.f32.mrb[0].mxu0
        %v2760 = vadd.f32 0.0, %v2759
        %v2761 = vpop.f32.mrb[0].mxu0
        %2762 = vmatprep.mubr.bf16.mxu0 0
        %2763 = vmatmul.mubr.bf16.gmra.mrb[0].mxu0 %v2653
        %v2764 = vpop.f32.mrb[0].mxu0
        %v2765 = vadd.f32 0.0, %v2764
        %v2766 = vpop.f32.mrb[0].mxu0
        %v2767 = vpop.f32.mrb[0].mxu0
        %v2768 = vadd.f32 0.0, %v2767
        %v2769 = vpop.f32.mrb[0].mxu0
        %2770 = vmatprep.mubr.bf16.mxu0 0
        %2771 = vmatmul.mubr.bf16.gmra.mrb[0].mxu0 %v2655
        %v2772 = vpop.f32.mrb[0].mxu0
        %v2773 = vadd.f32 0.0, %v2772
        %v2774 = vpop.f32.mrb[0].mxu0
        %v2775 = vpop.f32.mrb[0].mxu0
        %v2776 = vadd.f32 0.0, %v2775
        %v2777 = vpop.f32.mrb[0].mxu0
        %2778 = vmatprep.mubr.bf16.mxu0 0
        %2779 = vmatmul.mubr.bf16.gmra.mrb[0].mxu0 %v2657
        %v2780 = vpop.f32.mrb[0].mxu0
        %v2781 = vadd.f32 0.0, %v2780
        %v2782 = vpop.f32.mrb[0].mxu0
        %v2783 = vpop.f32.mrb[0].mxu0
        %v2784 = vadd.f32 0.0, %v2783
        %v2785 = vpop.f32.mrb[0].mxu0
        %2786 = vmatprep.mubr.bf16.mxu0 0
        %2787 = vmatmul.mubr.bf16.gmra.mrb[0].mxu0 %v2659
        %v2788 = vpop.f32.mrb[0].mxu0
        %v2789 = vadd.f32 0.0, %v2788
        %v2790 = vpop.f32.mrb[0].mxu0
        %v2791 = vpop.f32.mrb[0].mxu0
        %v2792 = vadd.f32 0.0, %v2791
        %v2793 = vpop.f32.mrb[0].mxu0
        %2794 = vmatprep.mubr.bf16.mxu0 0
        %2795 = vmatmul.mubr.bf16.gmra.mrb[0].mxu0 %v2661
        %v2796 = vpop.f32.mrb[0].mxu0
        %v2797 = vadd.f32 0.0, %v2796
        %v2798 = vpop.f32.mrb[0].mxu0
        %v2799 = vpop.f32.mrb[0].mxu0
        %v2800 = vadd.f32 0.0, %v2799
        %v2801 = vpop.f32.mrb[0].mxu0
        %2802 = vmatprep.mubr.bf16.mxu0 0
        %2803 = vmatmul.mubr.bf16.gmra.mrb[0].mxu0 %v2663
        %v2804 = vpop.f32.mrb[0].mxu0
        %v2805 = vadd.f32 0.0, %v2804
        %v2806 = vpop.f32.mrb[0].mxu0
        %v2807 = vpop.f32.mrb[0].mxu0
        %v2808 = vadd.f32 0.0, %v2807
        %v2809 = vpop.f32.mrb[0].mxu0
        %2810 = vmatprep.mubr.bf16.mxu0 0
        %2811 = vmatmul.mubr.bf16.gmra.mrb[0].mxu0 %v2665
        %v2812 = vpop.f32.mrb[0].mxu0
        %v2813 = vadd.f32 0.0, %v2812
        %v2814 = vpop.f32.mrb[0].mxu0
        %v2815 = vpop.f32.mrb[0].mxu0
        %v2816 = vadd.f32 0.0, %v2815
        %v2817 = vpop.f32.mrb[0].mxu0
        %2818 = vdwg.mxu0
        %v2819 = vadd.f32 %v2613, %v2757
        %v2820 = vadd.f32 %v2614, %v2760
        %v2821 = vadd.f32 %v2615, %v2765
        %v2822 = vadd.f32 %v2616, %v2768
        %v2823 = vadd.f32 %v2617, %v2773
        %v2824 = vadd.f32 %v2618, %v2776
        %v2825 = vadd.f32 %v2619, %v2781
        %v2826 = vadd.f32 %v2620, %v2784
        %v2827 = vadd.f32 %v2621, %v2789
        %v2828 = vadd.f32 %v2622, %v2792
        %v2829 = vadd.f32 %v2623, %v2797
        %v2830 = vadd.f32 %v2624, %v2800
        %v2831 = vadd.f32 %v2625, %v2805
        %v2832 = vadd.f32 %v2626, %v2808
        %v2833 = vadd.f32 %v2627, %v2813
        %v2834 = vadd.f32 %v2628, %v2816
        %s2835 = scalar_lea.vmem %s240, 128 [#allocation6]
        %v2836 = vld [vmem:[%s2835] sm:$0xff]
        %v2837 = vld [vmem:[%s2835 + $0x8] sm:$0xff]
        %v2838 = vld [vmem:[%s2835 + $0x10] sm:$0xff]
        %v2839 = vld [vmem:[%s2835 + $0x18] sm:$0xff]
        %v2840 = vld [vmem:[%s2835 + $0x20] sm:$0xff]
        %v2841 = vld [vmem:[%s2835 + $0x28] sm:$0xff]
        %v2842 = vld [vmem:[%s2835 + $0x30] sm:$0xff]
        %v2843 = vld [vmem:[%s2835 + $0x38] sm:$0xff]
        %v2844 = vld [vmem:[%s2835 + $0x40] sm:$0xff]
        %v2845 = vld [vmem:[%s2835 + $0x48] sm:$0xff]
        %v2846 = vld [vmem:[%s2835 + $0x50] sm:$0xff]
        %v2847 = vld [vmem:[%s2835 + $0x58] sm:$0xff]
        %v2848 = vld [vmem:[%s2835 + $0x60] sm:$0xff]
        %v2849 = vld [vmem:[%s2835 + $0x68] sm:$0xff]
        %v2850 = vld [vmem:[%s2835 + $0x70] sm:$0xff]
        %v2851 = vld [vmem:[%s2835 + $0x78] sm:$0xff]
        %v2852 = vmul.f32 %v2836, 0.4
        %v2853 = vmul.f32 %v2837, 0.4
        %v2854 = vmul.f32 %v2838, 0.4
        %v2855 = vmul.f32 %v2839, 0.4
        %v2856 = vmul.f32 %v2840, 0.4
        %v2857 = vmul.f32 %v2841, 0.4
        %v2858 = vmul.f32 %v2842, 0.4
        %v2859 = vmul.f32 %v2843, 0.4
        %v2860 = vmul.f32 %v2844, 0.4
        %v2861 = vmul.f32 %v2845, 0.4
        %v2862 = vmul.f32 %v2846, 0.4
        %v2863 = vmul.f32 %v2847, 0.4
        %v2864 = vmul.f32 %v2848, 0.4
        %v2865 = vmul.f32 %v2849, 0.4
        %v2866 = vmul.f32 %v2850, 0.4
        %v2867 = vmul.f32 %v2851, 0.4
        %v2868 = vmul.f32 %v2819, 0.33
        %v2869 = vmul.f32 %v2820, 0.33
        %v2870 = vmul.f32 %v2821, 0.33
        %v2871 = vmul.f32 %v2822, 0.33
        %v2872 = vmul.f32 %v2823, 0.33
        %v2873 = vmul.f32 %v2824, 0.33
        %v2874 = vmul.f32 %v2825, 0.33
        %v2875 = vmul.f32 %v2826, 0.33
        %v2876 = vmul.f32 %v2827, 0.33
        %v2877 = vmul.f32 %v2828, 0.33
        %v2878 = vmul.f32 %v2829, 0.33
        %v2879 = vmul.f32 %v2830, 0.33
        %v2880 = vmul.f32 %v2831, 0.33
        %v2881 = vmul.f32 %v2832, 0.33
        %v2882 = vmul.f32 %v2833, 0.33
        %v2883 = vmul.f32 %v2834, 0.33
        %v2884 = vadd.f32 %v2852, %v2868
        %v2885 = vadd.f32 %v2853, %v2869
        %v2886 = vadd.f32 %v2854, %v2870
        %v2887 = vadd.f32 %v2855, %v2871
        %v2888 = vadd.f32 %v2856, %v2872
        %v2889 = vadd.f32 %v2857, %v2873
        %v2890 = vadd.f32 %v2858, %v2874
        %v2891 = vadd.f32 %v2859, %v2875
        %v2892 = vadd.f32 %v2860, %v2876
        %v2893 = vadd.f32 %v2861, %v2877
        %v2894 = vadd.f32 %v2862, %v2878
        %v2895 = vadd.f32 %v2863, %v2879
        %v2896 = vadd.f32 %v2864, %v2880
        %v2897 = vadd.f32 %v2865, %v2881
        %v2898 = vadd.f32 %v2866, %v2882
        %v2899 = vadd.f32 %v2867, %v2883
        %s2900 = scalar_lea.vmem %s276, 128 [#allocation9]
        %2901 = vst [vmem:[%s2900] sm:$0xff] %v2884
        %2902 = vst [vmem:[%s2900 + $0x8] sm:$0xff] %v2885
        %2903 = vst [vmem:[%s2900 + $0x10] sm:$0xff] %v2886
        %2904 = vst [vmem:[%s2900 + $0x18] sm:$0xff] %v2887
        %2905 = vst [vmem:[%s2900 + $0x20] sm:$0xff] %v2888
        %2906 = vst [vmem:[%s2900 + $0x28] sm:$0xff] %v2889
        %2907 = vst [vmem:[%s2900 + $0x30] sm:$0xff] %v2890
        %2908 = vst [vmem:[%s2900 + $0x38] sm:$0xff] %v2891
        %2909 = vst [vmem:[%s2900 + $0x40] sm:$0xff] %v2892
        %2910 = vst [vmem:[%s2900 + $0x48] sm:$0xff] %v2893
        %2911 = vst [vmem:[%s2900 + $0x50] sm:$0xff] %v2894
        %2912 = vst [vmem:[%s2900 + $0x58] sm:$0xff] %v2895
        %2913 = vst [vmem:[%s2900 + $0x60] sm:$0xff] %v2896
        %2914 = vst [vmem:[%s2900 + $0x68] sm:$0xff] %v2897
        %2915 = vst [vmem:[%s2900 + $0x70] sm:$0xff] %v2898
        %2916 = vst [vmem:[%s2900 + $0x78] sm:$0xff] %v2899
        %s2917 = sand.u32 %s110, 1
        %s2918 = scalar_lea.sflag [#allocation5], %s2917
        %s2919 = sand.u32 %s110, 1
        %s2920 = smul.addr %s2919, 256
        %s2921 = scalar_lea.vmem [#allocation9], %s2920
        // Predicated region
        $region45: #{tpu_custom_call.1} parent=31 // pred_check
          %p2922 = pneg %p120
        $region46: #{tpu_custom_call.1} parent=31 // pred_check_branch
          %2924 = sbr.rel (%p2922) target = $region48
        $region47: #{tpu_custom_call.1} parent=31 // pred_region
          #allocation13 [shape = 'u32[6]{0}', space=smem, size = 0x18, scoped, tag = 'DMA stride descriptor']
          %s2925 = smul.u32 16, %s21
          %s2927 = ssub.s32 4096, 4096
          %2928 = vsyncadd %s2918, %s2927
          %s2929 = smul.addr %s2925, 128
          %s2930 = scalar_lea.hbm %s3, %s2929
          %s2932 = sshll.u32 1, 14
          %s2933 = sxor.u32 4294967295, %s2932
          %s2936 = sshll.u32 7, 18
          %s2937 = sxor.u32 4294967295, %s2936
          %s2938 = sand.u32 0, %s2937
          %s2940 = sor.u32 %s2938, 0
          %s2942 = sshll.u32 3, 24
          %s2943 = sxor.u32 4294967295, %s2942
          %s2944 = sand.u32 %s2940, %s2943
          %s2946 = sor.u32 %s2944, 0
          %s2947 = sshll.u32 %s2921, 4
          %s2948 = int_to_ptr.vmem [resolvable:$true] %s2947
          %2954 = sst [smem:[#allocation13]] 2048
          %s2955 = scalar_lea.smem [#allocation13], 1
          %2956 = sst [smem:[%s2955]] 6144
          %s2957 = scalar_lea.smem [#allocation13], 2
          %2958 = sst [smem:[%s2957]] 16
          %s2959 = scalar_lea.smem [#allocation13], 3
          %2960 = sst [smem:[%s2959]] 128
          %s2961 = scalar_lea.smem [#allocation13], 4
          %2962 = sst [smem:[%s2961]] 128
          %s2963 = scalar_lea.smem [#allocation13], 5
          %2964 = sst [smem:[%s2963]] 8
          %2966 = dma.general %s2948, 4096, %s2930, %s2918, [#allocation12], [#allocation13], %s2946, 0
        $region48: #{tpu_custom_call.1} parent=31 // pred_fallthru
          _
      $region32: #{tpu_custom_call.1} parent=5 // pred_fallthru
        _
      %p2967 = scmp.le.s32.totalorder 2, %s16
      // Predicated region
      $region49: #{tpu_custom_call.1} parent=5 // pred_check
        %p2968 = pneg %p2967
      $region50: #{tpu_custom_call.1} parent=5 // pred_check_branch
        %2970 = sbr.rel (%p2968) target = $region52
      $region51: #{tpu_custom_call.1} parent=5 // pred_region
        %s2971 = ssub.s32 %s16, 2
        // Predicated region
        $region53: #{tpu_custom_call.1} parent=51 // pred_check
          %p2972 = pneg %p126
        $region54: #{tpu_custom_call.1} parent=51 // pred_check_branch
          %2974 = sbr.rel (%p2972) target = $region56
        $region55: #{tpu_custom_call.1} parent=51 // pred_region
          %s2975 = sand.u32 %s111, 1
          %s2976 = scalar_lea.sflag [#allocation5], %s2975
          %s2977 = sand.u32 %s111, 1
          %s2978 = smul.addr %s2977, 256
          %s2979 = scalar_lea.vmem [#allocation9], %s2978
          %2980 = dma.done %s2976, 4096
        $region56: #{tpu_custom_call.1} parent=51 // pred_fallthru
          _
      $region52: #{tpu_custom_call.1} parent=5 // pred_fallthru
        _
    $region6: #{tpu_custom_call.1} parent=1 // loop_footer
      %s20 = sadd.s32 1, %s16
    $region7: #{tpu_custom_call.1} parent=1 // loop_footer_branch
      %15 = sbr.rel target = $region3
    $region8: #{tpu_custom_call.1} parent=1 // loop_exit
      _
    %2981 = vsyncpa [#allocation4], 1
    %s2982 = scalar_lea.sflag [#allocation4], 1
    %2983 = vsyncpa %s2982, 1
    %2984 = vsyncpa [#allocation7], 1
    %s2985 = scalar_lea.sflag [#allocation7], 1
    %2986 = vsyncpa %s2985, 1
    %2987 = vsyncpa [#allocation5], 1
    %s2988 = scalar_lea.sflag [#allocation5], 1
    %2989 = vsyncpa %s2988, 1

</llo_original>
